<compile_context>
chip_gen: v5e
topology: v5e:2x2
jax: 0.10.0
libtpu: 0.0.40
codegen_flags: <defaults>
</compile_context>

<pallas_src>
import math
import jax
import jax.numpy as jnp
from jax.experimental import pallas as pl
from jax.experimental.pallas import tpu as pltpu

# ---------------- config (args) ----------------
B        = 2      # batch
NUM_DIST = 4      # number of distractor images
D_IMG    = 16
D_HID    = 32
D_EMB    = 32
VOCAB    = 16
SEQ_LEN  = 8
TEMP     = 1.0
EPS_NORM = 1e-9

LANES  = 128
N_IMGS = B + B * NUM_DIST            # speaker image rows + flattened listener image rows

# weight-slab row offsets (all row counts are multiples of 8 -> tile-aligned ref slices)
R_BHD  = 0                           # (D_IMG , D_HID)   beholder img_to_hid
R_SWHC = R_BHD  + D_IMG              # (D_HID , 3H+V)    speaker [W_hh | W_voc]
R_SEW  = R_SWHC + D_HID              # (VOCAB , 3H)      speaker  emb @ W_ih
R_LEW  = R_SEW  + VOCAB              # (VOCAB , 3H)      listener emb @ W_ih
R_LWHH = R_LEW  + VOCAB              # (D_HID , 3H)      listener W_hh
R_LWO  = R_LWHH + D_HID              # (D_HID , D_HID)   listener hid_to_hid
W_ROWS = R_LWO  + D_HID              # = 144

# bias-slab rows
BR_BHD, BR_GI0, BR_SPK, BR_LSN, BR_LWO = 0, 1, 2, 3, 4
B_ROWS = 8

VMEM = pl.BlockSpec(memory_space=pltpu.MemorySpace.VMEM)


def _gru_gates(gi, gh, h, b_rz, b_in, b_hn):
    """PyTorch GRUCell, gate order (r,z,n). gi/gh may be wider than 3H; only lanes [0:3H)
    are read. b_rz = (b_ih + b_hh)[:2H] pre-combined, b_in / b_hn = n-gate input/hidden biases."""
    H = D_HID
    rz = jax.nn.sigmoid(gi[:, :2 * H] + gh[:, :2 * H] + b_rz)
    r = rz[:, :H]
    z = rz[:, H:2 * H]
    n = jnp.tanh(gi[:, 2 * H:3 * H] + b_in + r * (gh[:, 2 * H:3 * H] + b_hn))
    return (1.0 - z) * n + z * h


# ---------------- fused SingleAgent forward kernel ----------------
def agent_kernel(imgs_ref, gumbel_ref, w_ref, b_ref,
                 spk_logits_ref, cap_len_ref, hid_ref):
    H, H3 = D_HID, 3 * D_HID

    # static, 8-sublane-aligned row slices of the packed weight slab (free)
    w_bhd  = w_ref[R_BHD:R_BHD + D_IMG, :]
    w_swhc = w_ref[R_SWHC:R_SWHC + H, :]
    w_sew  = w_ref[R_SEW:R_SEW + VOCAB, :]
    w_lew  = w_ref[R_LEW:R_LEW + VOCAB, :]
    w_lwhh = w_ref[R_LWHH:R_LWHH + H, :]
    w_lwo  = w_ref[R_LWO:R_LWO + H, :]
    biases = b_ref[...]                                              # (8, 128)

    # ----- Beholder (shared): one Linear + unit_norm over speaker + listener images -----
    h_all = jnp.dot(imgs_ref[...], w_bhd, preferred_element_type=jnp.float32)[:, :H]
    h_all = h_all + biases[BR_BHD:BR_BHD + 1, :H]
    # dropout: eval-mode identity
    inv_n = pl.reciprocal(
        jnp.sqrt(jnp.sum(h_all * h_all, axis=1, keepdims=True)) + EPS_NORM, approx=True)
    h_all = h_all * inv_n
    spk_h = h_all[:B, :]                         # speaker image embedding -> GRU h_0
    hid_ref[0:B * NUM_DIST, :] = h_all[B:, :]    # listener distractor embeddings (rows 0:8)

    # ----- Speaker (biases broadcast once; loops fully unrolled) -----
    gumbel = gumbel_ref[...]                                          # (B, SEQ_LEN*VOCAB)
    gi0  = jnp.broadcast_to(biases[BR_GI0:BR_GI0 + 1, :], (B, LANES))  # emb[<bos>=2] @ W_ih
    srow = jnp.broadcast_to(biases[BR_SPK:BR_SPK + 1, :], (B, LANES))
    b_rz_s, b_in_s, b_hn_s = srow[:, :2 * H], srow[:, 2 * H:3 * H], srow[:, 3 * H:]

    col = jax.lax.broadcasted_iota(jnp.int32, (B, VOCAB), 1)
    onehot0 = (col == 0).astype(jnp.float32)                          # pad-token one-hot

    # priming step: out_, hid_ = rnn(emb(<bos>), h_img)
    comb = jnp.dot(spk_h, w_swhc, preferred_element_type=jnp.float32)
    h = _gru_gates(gi0, comb, spk_h, b_rz_s, b_in_s, b_hn_s)

    out_logits = []                     # post-processed one-hot logits, per step
    pad_gs = []                         # "still before first EOS" mask, per step
    seen_eos = jnp.zeros((B, 1), dtype=jnp.bool_)
    cap_cnt = jnp.zeros((B, 1), dtype=jnp.int32)

    for idx in range(SEQ_LEN):
        # single MXU push: [h @ W_hh | h @ W_voc]  (hid gates for next step + this step's logits)
        comb = jnp.dot(h, w_swhc, preferred_element_type=jnp.float32)       # (B, 128)
        # gumbel already carries the hid_to_voc bias and the idx==0 token-3 ban
        y = comb[:, H3:H3 + VOCAB] + gumbel[:, idx * VOCAB:(idx + 1) * VOCAB]
        if TEMP != 1.0:
            y = y * (1.0 / TEMP)        # does not affect argmax; kept for faithfulness

        # hard straight-through forward value: one_hot(argmax(y)); softmax dropped since
        # argmax(softmax(y)) == argmax(y). First-max tie-break like torch.max.
        # (manual two-reduce argmax kept: argmax_p lowering in Mosaic is not relied on)
        maxv = jnp.max(y, axis=1, keepdims=True)
        sel = jnp.min(jnp.where(y >= maxv, col, VOCAB), axis=1, keepdims=True)
        c_logit = (col == sel).astype(jnp.float32)

        # EOS / padding post-processing (torch: force EOS at last step, pad from first EOS on)
        if idx == SEQ_LEN - 1:
            pad_g = jnp.zeros((B, 1), dtype=jnp.bool_)     # forced EOS -> always padded here
        else:
            seen_eos = jnp.logical_or(seen_eos, sel == 3)
            pad_g = jnp.logical_not(seen_eos)
        out_logits.append(jnp.where(pad_g, c_logit, onehot0))
        pad_gs.append(pad_g)
        cap_cnt = cap_cnt + pad_g.astype(jnp.int32)

        if idx < SEQ_LEN - 1:
            # next input: raw one-hot through the fused (emb @ W_ih) matrix (exact for one-hots)
            gi = jnp.dot(c_logit, w_sew, preferred_element_type=jnp.float32)
            h = _gru_gates(gi, comb, h, b_rz_s, b_in_s, b_hn_s)

    # single lane-dense speaker store + tiny cap_len store
    spk_logits_ref[...] = jnp.concatenate(out_logits, axis=1)          # (B, SEQ_LEN*VOCAB)
    cap_len_ref[...] = cap_cnt + 1                                     # (B, 1) int32

    # ----- Listener: batched emb-matmul + length-masked GRU + hid_to_hid + unit_norm -----
    lrow = jnp.broadcast_to(biases[BR_LSN:BR_LSN + 1, :], (B, LANES))
    b_rz_l, b_in_l, b_hn_l = lrow[:, :2 * H], lrow[:, 2 * H:3 * H], lrow[:, 3 * H:]

    # one MXU push for all SEQ_LEN-1 input-gate projections (was 7 serial pushes)
    stacked = jnp.concatenate(out_logits[:SEQ_LEN - 1], axis=0)        # ((SEQ_LEN-1)*B, VOCAB)
    gi_all = jnp.dot(stacked, w_lew, preferred_element_type=jnp.float32)

    hl = jnp.zeros((B, H), jnp.float32)                                 # h_0 = zeros
    for t in range(SEQ_LEN - 1):                                        # spk_logits[:, :-1, :]
        gi_t = gi_all[t * B:(t + 1) * B, :]
        if t == 0:
            gh = jnp.zeros((B, H3), jnp.float32)                        # h_0 == 0: skip the push
        else:
            gh = jnp.dot(hl, w_lwhh, preferred_element_type=jnp.float32)
        h_new = _gru_gates(gi_t, gh, hl, b_rz_l, b_in_l, b_hn_l)
        # pack_padded_sequence semantics: row i's hidden stops updating at step cap_len_i - 1
        # (t < cap_len-1  <=>  pad_g at step t).  A zero length would leave hl at zeros (torch
        # would raise); harmless here since an EOS is always force-appended.
        hl = jnp.where(pad_gs[t], h_new, hl)

    out = jnp.dot(hl, w_lwo, preferred_element_type=jnp.float32)[:, :H]
    out = out + biases[BR_LWO:BR_LWO + 1, :H]
    inv_o = pl.reciprocal(
        jnp.sqrt(jnp.sum(out * out, axis=1, keepdims=True)) + EPS_NORM, approx=True)
    hid_ref[B * NUM_DIST:B * NUM_DIST + B, :] = out * inv_o             # rnn_hid (last B rows)


# ---------------- SingleAgent forward (thin jitted wrapper) ----------------
@jax.jit
def single_agent_forward(data1, params, gumbel_noise):
    a_spk_img, b_lsn_imgs, a_spk_caps_in, a_spk_cap_lens = data1   # caps unused by forward
    num_dist = b_lsn_imgs.shape[1]
    H = D_HID

    # ---- operand coalescing (tiny ops, traced once per call under jit) ----
    imgs = jnp.concatenate([a_spk_img, b_lsn_imgs.reshape(-1, D_IMG)], axis=0)

    def _pad_wt(w):
        r, c = w.shape
        return jnp.pad(w.astype(jnp.float32), ((0, (-r) % 8), (0, LANES - c)))

    spk_whc = jnp.concatenate([params["spk_whh_t"], params["spk_wv_t"]], axis=1)   # (H, 3H+V)
    w_slab = jnp.concatenate([
        _pad_wt(params["bhd_w_t"]),                         # R_BHD
        _pad_wt(spk_whc),                                   # R_SWHC
        _pad_wt(params["spk_emb"] @ params["spk_wih_t"]),   # R_SEW
        _pad_wt(params["lsn_emb"] @ params["lsn_wih_t"]),   # R_LEW
        _pad_wt(params["lsn_whh_t"]),                       # R_LWHH
        _pad_wt(params["lsn_wo_t"]),                        # R_LWO
    ], axis=0)                                              # (W_ROWS, 128)

    def _bias_row(*parts):
        v = jnp.concatenate(parts, axis=1).astype(jnp.float32)
        return jnp.pad(v, ((0, 0), (0, LANES - v.shape[1])))

    spk_gi0 = params["spk_emb"][2:3, :] @ params["spk_wih_t"]          # <bos>=2 row, no bias
    b_slab = jnp.concatenate([
        _bias_row(params["bhd_b"]),                                                   # BR_BHD
        _bias_row(spk_gi0),                                                           # BR_GI0
        _bias_row(params["spk_bih"][:, :2 * H] + params["spk_bhh"][:, :2 * H],
                  params["spk_bih"][:, 2 * H:], params["spk_bhh"][:, 2 * H:]),        # BR_SPK
        _bias_row(params["lsn_bih"][:, :2 * H] + params["lsn_bhh"][:, :2 * H],
                  params["lsn_bih"][:, 2 * H:], params["lsn_bhh"][:, 2 * H:]),        # BR_LSN
        _bias_row(params["lsn_bo"]),                                                  # BR_LWO
        jnp.zeros((B_ROWS - 5, LANES), jnp.float32),
    ], axis=0)                                                                        # (8, 128)

    # gumbel: fold hid_to_voc bias + step-0 token-3 ban, lay out lane-dense (B, SEQ_LEN*VOCAB)
    g = gumbel_noise + params["spk_bv"][None, :, :]
    g = g.at[0, :, 3].set(-1e30)
    gumbel_lane = jnp.transpose(g, (1, 0, 2)).reshape(B, SEQ_LEN * VOCAB)

    out_shape = (
        jax.ShapeDtypeStruct((B, SEQ_LEN * VOCAB), jnp.float32),       # spk_logits (lane-dense)
        jax.ShapeDtypeStruct((B, 1), jnp.int32),                       # cap_len
        jax.ShapeDtypeStruct((B * NUM_DIST + B, D_HID), jnp.float32),  # [lsn_h_imgs ; rnn_hid]
    )
    spk_logits_flat, cap_len, hid_all = pl.pallas_call(
        agent_kernel,
        out_shape=out_shape,
        in_specs=[VMEM] * 4,
        out_specs=(VMEM,) * 3,
    )(imgs, gumbel_lane, w_slab, b_slab)

    spk_logits = spk_logits_flat.reshape(B, SEQ_LEN, VOCAB)            # free row-major reshape
    # torch's padded labels are exactly the argmax of the padded one-hot logits
    comm_action = jnp.argmax(spk_logits, axis=-1).astype(jnp.int32)
    lsn_h_imgs = hid_all[:B * NUM_DIST].reshape(B, num_dist, D_HID)
    rnn_hid = jnp.broadcast_to(hid_all[B * NUM_DIST:][:, None, :], (B, num_dist, D_HID))
    cl = cap_len.reshape(B).astype(jnp.float32)

    # lenlen is False in the reference -> end_idx_ = 0, end_loss_ = 0
    return (spk_logits, (rnn_hid, lsn_h_imgs), comm_action, (0, 0),
            (jnp.min(cl), jnp.mean(cl), jnp.max(cl)))


# ---------------- deterministic parameter init ----------------
def _uniform(key, shape, fan_in):
    bound = 1.0 / math.sqrt(fan_in)
    return jax.random.uniform(key, shape, jnp.float32, -bound, bound)


def init_params(key):
    ks = jax.random.split(key, 16)
    p = {}
    # Beholder: Linear(D_img, D_hid)  (weights stored transposed)
    p["bhd_w_t"] = _uniform(ks[0], (D_IMG, D_HID), D_IMG)
    p["bhd_b"] = _uniform(ks[1], (1, D_HID), D_IMG)
    # Speaker embedding (padding_idx=0 -> row 0 zero), GRU, hid_to_voc
    spk_emb = jax.random.normal(ks[2], (VOCAB, D_EMB), jnp.float32)
    p["spk_emb"] = spk_emb.at[0].set(0.0)
    p["spk_wih_t"] = _uniform(ks[3], (D_EMB, 3 * D_HID), D_HID)
    p["spk_whh_t"] = _uniform(ks[4], (D_HID, 3 * D_HID), D_HID)
    p["spk_bih"] = _uniform(ks[5], (1, 3 * D_HID), D_HID)
    p["spk_bhh"] = _uniform(ks[6], (1, 3 * D_HID), D_HID)
    p["spk_wv_t"] = _uniform(ks[7], (D_HID, VOCAB), D_HID)
    p["spk_bv"] = _uniform(ks[8], (1, VOCAB), D_HID)
    # Listener embedding, GRU, hid_to_hid
    lsn_emb = jax.random.normal(ks[9], (VOCAB, D_EMB), jnp.float32)
    p["lsn_emb"] = lsn_emb.at[0].set(0.0)
    p["lsn_wih_t"] = _uniform(ks[10], (D_EMB, 3 * D_HID), D_HID)
    p["lsn_whh_t"] = _uniform(ks[11], (D_HID, 3 * D_HID), D_HID)
    p["lsn_bih"] = _uniform(ks[12], (1, 3 * D_HID), D_HID)
    p["lsn_bhh"] = _uniform(ks[13], (1, 3 * D_HID), D_HID)
    p["lsn_wo_t"] = _uniform(ks[14], (D_HID, D_HID), D_HID)
    p["lsn_bo"] = _uniform(ks[15], (1, D_HID), D_HID)
    return p


if __name__ == "__main__":
    key = jax.random.PRNGKey(0)
    kp, kg, k1, k2 = jax.random.split(key, 4)

    params = init_params(kp)

    # TODO(synk): torch's in-kernel FloatTensor.uniform_ RNG has no Pallas equivalent;
    # Gumbel noise is precomputed deterministically here and passed into the kernel.
    u = jax.random.uniform(kg, (SEQ_LEN, B, VOCAB), jnp.float32, 0.0, 1.0)
    gumbel_noise = -jnp.log(-jnp.log(u + 1e-20) + 1e-20)

    a_spk_img = jax.random.normal(k1, (B, D_IMG), jnp.float32)
    b_lsn_imgs = jax.random.normal(k2, (B, NUM_DIST, D_IMG), jnp.float32)
    a_spk_caps_in = jnp.zeros((B, SEQ_LEN), jnp.int32)       # unused by forward
    a_spk_cap_lens = jnp.full((B,), SEQ_LEN, jnp.int32)      # unused by forward

    data1 = (a_spk_img, b_lsn_imgs, a_spk_caps_in, a_spk_cap_lens)
    out = single_agent_forward(data1, params, gumbel_noise)
    jax.block_until_ready(out)

    spk_logits, (rnn_hid, lsn_h_imgs), comm_action, _, stats = out
    assert spk_logits.shape == (B, SEQ_LEN, VOCAB)
    assert rnn_hid.shape == (B, NUM_DIST, D_HID)
    assert lsn_h_imgs.shape == (B, NUM_DIST, D_HID)
    assert comm_action.shape == (B, SEQ_LEN)
    print("KERNEL_OK")
</pallas_src>

<mosaic_0001>
module attributes {stable_mosaic.version = 11 : i64} {
  func.func @agent_kernel(%arg0: memref<10x16xf32, #tpu.memory_space<vmem>>, %arg1: memref<2x128xf32, #tpu.memory_space<vmem>>, %arg2: memref<144x128xf32, #tpu.memory_space<vmem>>, %arg3: memref<8x128xf32, #tpu.memory_space<vmem>>, %arg4: memref<2x128xf32, #tpu.memory_space<vmem>>, %arg5: memref<2x1xi32, #tpu.memory_space<vmem>>, %arg6: memref<10x32xf32, #tpu.memory_space<vmem>>) attributes {dimension_semantics = [], scalar_prefetch = 0 : i64, scratch_operands = 0 : i64, tpu.core_type = #tpu.core_type<tc>} {
    %c0 = arith.constant 0 : index
    %c0_0 = arith.constant 0 : index
    %0 = vector.load %arg2[%c0, %c0_0] : memref<144x128xf32, #tpu.memory_space<vmem>>, vector<16x128xf32>
    %c16 = arith.constant 16 : index
    %c0_1 = arith.constant 0 : index
    %1 = vector.load %arg2[%c16, %c0_1] : memref<144x128xf32, #tpu.memory_space<vmem>>, vector<32x128xf32>
    %c48 = arith.constant 48 : index
    %c0_2 = arith.constant 0 : index
    %2 = vector.load %arg2[%c48, %c0_2] : memref<144x128xf32, #tpu.memory_space<vmem>>, vector<16x128xf32>
    %c64 = arith.constant 64 : index
    %c0_3 = arith.constant 0 : index
    %3 = vector.load %arg2[%c64, %c0_3] : memref<144x128xf32, #tpu.memory_space<vmem>>, vector<16x128xf32>
    %c80 = arith.constant 80 : index
    %c0_4 = arith.constant 0 : index
    %4 = vector.load %arg2[%c80, %c0_4] : memref<144x128xf32, #tpu.memory_space<vmem>>, vector<32x128xf32>
    %c112 = arith.constant 112 : index
    %c0_5 = arith.constant 0 : index
    %5 = vector.load %arg2[%c112, %c0_5] : memref<144x128xf32, #tpu.memory_space<vmem>>, vector<32x128xf32>
    %c0_6 = arith.constant 0 : index
    %c0_7 = arith.constant 0 : index
    %6 = vector.load %arg3[%c0_6, %c0_7] : memref<8x128xf32, #tpu.memory_space<vmem>>, vector<8x128xf32>
    %c0_8 = arith.constant 0 : index
    %c0_9 = arith.constant 0 : index
    %7 = vector.load %arg0[%c0_8, %c0_9] : memref<10x16xf32, #tpu.memory_space<vmem>>, vector<10x16xf32>
    %cst = arith.constant dense<0.000000e+00> : vector<10x128xf32>
    %8 = tpu.matmul %7, %0, %cst {dimension_numbers = #tpu.dot_dimension_numbers<[1], [0], [0], [1], [0, 0, 1, 1], [], []>} : vector<10x16xf32>, vector<16x128xf32>, vector<10x128xf32> -> vector<10x128xf32>
    %9 = vector.extract_strided_slice %8 {offsets = [0, 0], sizes = [10, 32], strides = [1, 1]} : vector<10x128xf32> to vector<10x32xf32>
    %10 = vector.extract_strided_slice %6 {offsets = [0, 0], sizes = [1, 32], strides = [1, 1]} : vector<8x128xf32> to vector<1x32xf32>
    %11 = vector.broadcast %10 : vector<1x32xf32> to vector<10x32xf32>
    %12 = arith.addf %9, %11 : vector<10x32xf32>
    %13 = arith.mulf %12, %12 : vector<10x32xf32>
    %cst_10 = arith.constant dense<0.000000e+00> : vector<10xf32>
    %14 = vector.multi_reduction <add>, %13, %cst_10 [1] : vector<10x32xf32> to vector<10xf32>
    %15 = vector.shape_cast %14 : vector<10xf32> to vector<10x1xf32>
    %16 = math.sqrt %15 : vector<10x1xf32>
    %cst_11 = arith.constant 9.99999971E-10 : f32
    %17 = vector.broadcast %cst_11 : f32 to vector<10x1xf32>
    %18 = arith.addf %16, %17 : vector<10x1xf32>
    %19 = tpu.reciprocal %18 {approx = true} : vector<10x1xf32> -> vector<10x1xf32>
    %20 = vector.broadcast %19 : vector<10x1xf32> to vector<10x32xf32>
    %21 = arith.mulf %12, %20 : vector<10x32xf32>
    %22 = vector.extract_strided_slice %21 {offsets = [0, 0], sizes = [2, 32], strides = [1, 1]} : vector<10x32xf32> to vector<2x32xf32>
    %23 = vector.extract_strided_slice %21 {offsets = [2, 0], sizes = [8, 32], strides = [1, 1]} : vector<10x32xf32> to vector<8x32xf32>
    %c0_12 = arith.constant 0 : index
    %c0_13 = arith.constant 0 : index
    %24 = vector.load %arg6[%c0_12, %c0_13] : memref<10x32xf32, #tpu.memory_space<vmem>>, vector<8x32xf32>
    tpu.vector_store %arg6[%c0_12, %c0_13], %23 {strides = array<i32>} : memref<10x32xf32, #tpu.memory_space<vmem>>, vector<8x32xf32>,
    %c0_14 = arith.constant 0 : index
    %c0_15 = arith.constant 0 : index
    %25 = vector.load %arg1[%c0_14, %c0_15] : memref<2x128xf32, #tpu.memory_space<vmem>>, vector<2x128xf32>
    %26 = vector.extract_strided_slice %6 {offsets = [1, 0], sizes = [1, 128], strides = [1, 1]} : vector<8x128xf32> to vector<1x128xf32>
    %27 = vector.shape_cast %26 : vector<1x128xf32> to vector<1x128xf32>
    %28 = vector.broadcast %27 : vector<1x128xf32> to vector<2x128xf32>
    %29 = vector.extract_strided_slice %6 {offsets = [2, 0], sizes = [1, 128], strides = [1, 1]} : vector<8x128xf32> to vector<1x128xf32>
    %30 = vector.shape_cast %29 : vector<1x128xf32> to vector<1x128xf32>
    %31 = vector.broadcast %30 : vector<1x128xf32> to vector<2x128xf32>
    %32 = vector.extract_strided_slice %31 {offsets = [0, 0], sizes = [2, 64], strides = [1, 1]} : vector<2x128xf32> to vector<2x64xf32>
    %33 = vector.extract_strided_slice %31 {offsets = [0, 64], sizes = [2, 32], strides = [1, 1]} : vector<2x128xf32> to vector<2x32xf32>
    %34 = vector.extract_strided_slice %31 {offsets = [0, 96], sizes = [2, 32], strides = [1, 1]} : vector<2x128xf32> to vector<2x32xf32>
    %35 = tpu.iota {dimensions = array<i32: 1>} : vector<2x16xi32>
    %c0_i32 = arith.constant 0 : i32
    %36 = vector.broadcast %c0_i32 : i32 to vector<2x16xi32>
    %37 = arith.cmpi eq, %35, %36 : vector<2x16xi32>
    %38 = arith.extui %37 : vector<2x16xi1> to vector<2x16xi32>
    %39 = arith.sitofp %38 : vector<2x16xi32> to vector<2x16xf32>
    %cst_16 = arith.constant dense<0.000000e+00> : vector<2x128xf32>
    %40 = tpu.matmul %22, %1, %cst_16 {dimension_numbers = #tpu.dot_dimension_numbers<[1], [0], [0], [1], [0, 0, 1, 1], [], []>} : vector<2x32xf32>, vector<32x128xf32>, vector<2x128xf32> -> vector<2x128xf32>
    %41 = vector.extract_strided_slice %28 {offsets = [0, 0], sizes = [2, 64], strides = [1, 1]} : vector<2x128xf32> to vector<2x64xf32>
    %42 = vector.extract_strided_slice %40 {offsets = [0, 0], sizes = [2, 64], strides = [1, 1]} : vector<2x128xf32> to vector<2x64xf32>
    %43 = arith.addf %41, %42 : vector<2x64xf32>
    %44 = arith.addf %43, %32 : vector<2x64xf32>
    %45 = arith.negf %44 : vector<2x64xf32>
    %46 = math.exp %45 : vector<2x64xf32>
    %cst_17 = arith.constant 1.000000e+00 : f32
    %47 = vector.broadcast %cst_17 : f32 to vector<2x64xf32>
    %48 = arith.addf %47, %46 : vector<2x64xf32>
    %49 = arith.divf %47, %48 : vector<2x64xf32>
    %50 = vector.extract_strided_slice %49 {offsets = [0, 0], sizes = [2, 32], strides = [1, 1]} : vector<2x64xf32> to vector<2x32xf32>
    %51 = vector.extract_strided_slice %49 {offsets = [0, 32], sizes = [2, 32], strides = [1, 1]} : vector<2x64xf32> to vector<2x32xf32>
    %52 = vector.extract_strided_slice %28 {offsets = [0, 64], sizes = [2, 32], strides = [1, 1]} : vector<2x128xf32> to vector<2x32xf32>
    %53 = arith.addf %52, %33 : vector<2x32xf32>
    %54 = vector.extract_strided_slice %40 {offsets = [0, 64], sizes = [2, 32], strides = [1, 1]} : vector<2x128xf32> to vector<2x32xf32>
    %55 = arith.addf %54, %34 : vector<2x32xf32>
    %56 = arith.mulf %50, %55 : vector<2x32xf32>
    %57 = arith.addf %53, %56 : vector<2x32xf32>
    %58 = math.tanh %57 : vector<2x32xf32>
    %cst_18 = arith.constant 1.000000e+00 : f32
    %59 = vector.broadcast %cst_18 : f32 to vector<2x32xf32>
    %60 = arith.subf %59, %51 : vector<2x32xf32>
    %61 = arith.mulf %60, %58 : vector<2x32xf32>
    %62 = arith.mulf %51, %22 : vector<2x32xf32>
    %63 = arith.addf %61, %62 : vector<2x32xf32>
    %false = arith.constant false
    %64 = vector.broadcast %false : i1 to vector<2x1xi1>
    %c0_i32_19 = arith.constant 0 : i32
    %65 = vector.broadcast %c0_i32_19 : i32 to vector<2x1xi32>
    %cst_20 = arith.constant dense<0.000000e+00> : vector<2x128xf32>
    %66 = tpu.matmul %63, %1, %cst_20 {dimension_numbers = #tpu.dot_dimension_numbers<[1], [0], [0], [1], [0, 0, 1, 1], [], []>} : vector<2x32xf32>, vector<32x128xf32>, vector<2x128xf32> -> vector<2x128xf32>
    %67 = vector.extract_strided_slice %66 {offsets = [0, 96], sizes = [2, 16], strides = [1, 1]} : vector<2x128xf32> to vector<2x16xf32>
    %68 = vector.extract_strided_slice %25 {offsets = [0, 0], sizes = [2, 16], strides = [1, 1]} : vector<2x128xf32> to vector<2x16xf32>
    %69 = arith.addf %67, %68 : vector<2x16xf32>
    %cst_21 = arith.constant dense<0xFF800000> : vector<2xf32>
    %70 = vector.multi_reduction <maximumf>, %69, %cst_21 [1] : vector<2x16xf32> to vector<2xf32>
    %71 = vector.shape_cast %70 : vector<2xf32> to vector<2x1xf32>
    %72 = vector.broadcast %71 : vector<2x1xf32> to vector<2x16xf32>
    %73 = arith.cmpf oge, %69, %72 : vector<2x16xf32>
    %c16_i32 = arith.constant 16 : i32
    %74 = vector.broadcast %c16_i32 : i32 to vector<2x16xi32>
    %75 = arith.select %73, %35, %74 : vector<2x16xi1>, vector<2x16xi32>
    %cst_22 = arith.constant dense<2147483647> : vector<2xi32>
    %76 = vector.multi_reduction <minsi>, %75, %cst_22 [1] : vector<2x16xi32> to vector<2xi32>
    %77 = vector.shape_cast %76 : vector<2xi32> to vector<2x1xi32>
    %78 = vector.broadcast %77 : vector<2x1xi32> to vector<2x16xi32>
    %79 = arith.cmpi eq, %35, %78 : vector<2x16xi32>
    %80 = arith.extui %79 : vector<2x16xi1> to vector<2x16xi32>
    %81 = arith.sitofp %80 : vector<2x16xi32> to vector<2x16xf32>
    %c3_i32 = arith.constant 3 : i32
    %82 = vector.broadcast %c3_i32 : i32 to vector<2x1xi32>
    %83 = arith.cmpi eq, %77, %82 : vector<2x1xi32>
    %84 = arith.ori %64, %83 : vector<2x1xi1>
    %cst_23 = arith.constant dense<true> : vector<2x1xi1>
    %85 = arith.xori %84, %cst_23 : vector<2x1xi1>
    %86 = vector.shape_cast %85 : vector<2x1xi1> to vector<2x1xi1>
    %87 = vector.broadcast %86 : vector<2x1xi1> to vector<2x16xi1>
    %88 = arith.select %87, %81, %39 : vector<2x16xi1>, vector<2x16xf32>
    %89 = arith.extui %85 : vector<2x1xi1> to vector<2x1xi32>
    %90 = arith.addi %65, %89 : vector<2x1xi32>
    %cst_24 = arith.constant dense<0.000000e+00> : vector<2x128xf32>
    %91 = tpu.matmul %81, %2, %cst_24 {dimension_numbers = #tpu.dot_dimension_numbers<[1], [0], [0], [1], [0, 0, 1, 1], [], []>} : vector<2x16xf32>, vector<16x128xf32>, vector<2x128xf32> -> vector<2x128xf32>
    %92 = vector.extract_strided_slice %91 {offsets = [0, 0], sizes = [2, 64], strides = [1, 1]} : vector<2x128xf32> to vector<2x64xf32>
    %93 = vector.extract_strided_slice %66 {offsets = [0, 0], sizes = [2, 64], strides = [1, 1]} : vector<2x128xf32> to vector<2x64xf32>
    %94 = arith.addf %92, %93 : vector<2x64xf32>
    %95 = arith.addf %94, %32 : vector<2x64xf32>
    %96 = arith.negf %95 : vector<2x64xf32>
    %97 = math.exp %96 : vector<2x64xf32>
    %cst_25 = arith.constant 1.000000e+00 : f32
    %98 = vector.broadcast %cst_25 : f32 to vector<2x64xf32>
    %99 = arith.addf %98, %97 : vector<2x64xf32>
    %100 = arith.divf %98, %99 : vector<2x64xf32>
    %101 = vector.extract_strided_slice %100 {offsets = [0, 0], sizes = [2, 32], strides = [1, 1]} : vector<2x64xf32> to vector<2x32xf32>
    %102 = vector.extract_strided_slice %100 {offsets = [0, 32], sizes = [2, 32], strides = [1, 1]} : vector<2x64xf32> to vector<2x32xf32>
    %103 = vector.extract_strided_slice %91 {offsets = [0, 64], sizes = [2, 32], strides = [1, 1]} : vector<2x128xf32> to vector<2x32xf32>
    %104 = arith.addf %103, %33 : vector<2x32xf32>
    %105 = vector.extract_strided_slice %66 {offsets = [0, 64], sizes = [2, 32], strides = [1, 1]} : vector<2x128xf32> to vector<2x32xf32>
    %106 = arith.addf %105, %34 : vector<2x32xf32>
    %107 = arith.mulf %101, %106 : vector<2x32xf32>
    %108 = arith.addf %104, %107 : vector<2x32xf32>
    %109 = math.tanh %108 : vector<2x32xf32>
    %cst_26 = arith.constant 1.000000e+00 : f32
    %110 = vector.broadcast %cst_26 : f32 to vector<2x32xf32>
    %111 = arith.subf %110, %102 : vector<2x32xf32>
    %112 = arith.mulf %111, %109 : vector<2x32xf32>
    %113 = arith.mulf %102, %63 : vector<2x32xf32>
    %114 = arith.addf %112, %113 : vector<2x32xf32>
    %cst_27 = arith.constant dense<0.000000e+00> : vector<2x128xf32>
    %115 = tpu.matmul %114, %1, %cst_27 {dimension_numbers = #tpu.dot_dimension_numbers<[1], [0], [0], [1], [0, 0, 1, 1], [], []>} : vector<2x32xf32>, vector<32x128xf32>, vector<2x128xf32> -> vector<2x128xf32>
    %116 = vector.extract_strided_slice %115 {offsets = [0, 96], sizes = [2, 16], strides = [1, 1]} : vector<2x128xf32> to vector<2x16xf32>
    %117 = vector.extract_strided_slice %25 {offsets = [0, 16], sizes = [2, 16], strides = [1, 1]} : vector<2x128xf32> to vector<2x16xf32>
    %118 = arith.addf %116, %117 : vector<2x16xf32>
    %cst_28 = arith.constant dense<0xFF800000> : vector<2xf32>
    %119 = vector.multi_reduction <maximumf>, %118, %cst_28 [1] : vector<2x16xf32> to vector<2xf32>
    %120 = vector.shape_cast %119 : vector<2xf32> to vector<2x1xf32>
    %121 = vector.broadcast %120 : vector<2x1xf32> to vector<2x16xf32>
    %122 = arith.cmpf oge, %118, %121 : vector<2x16xf32>
    %c16_i32_29 = arith.constant 16 : i32
    %123 = vector.broadcast %c16_i32_29 : i32 to vector<2x16xi32>
    %124 = arith.select %122, %35, %123 : vector<2x16xi1>, vector<2x16xi32>
    %cst_30 = arith.constant dense<2147483647> : vector<2xi32>
    %125 = vector.multi_reduction <minsi>, %124, %cst_30 [1] : vector<2x16xi32> to vector<2xi32>
    %126 = vector.shape_cast %125 : vector<2xi32> to vector<2x1xi32>
    %127 = vector.broadcast %126 : vector<2x1xi32> to vector<2x16xi32>
    %128 = arith.cmpi eq, %35, %127 : vector<2x16xi32>
    %129 = arith.extui %128 : vector<2x16xi1> to vector<2x16xi32>
    %130 = arith.sitofp %129 : vector<2x16xi32> to vector<2x16xf32>
    %c3_i32_31 = arith.constant 3 : i32
    %131 = vector.broadcast %c3_i32_31 : i32 to vector<2x1xi32>
    %132 = arith.cmpi eq, %126, %131 : vector<2x1xi32>
    %133 = arith.ori %84, %132 : vector<2x1xi1>
    %cst_32 = arith.constant dense<true> : vector<2x1xi1>
    %134 = arith.xori %133, %cst_32 : vector<2x1xi1>
    %135 = vector.shape_cast %134 : vector<2x1xi1> to vector<2x1xi1>
    %136 = vector.broadcast %135 : vector<2x1xi1> to vector<2x16xi1>
    %137 = arith.select %136, %130, %39 : vector<2x16xi1>, vector<2x16xf32>
    %138 = arith.extui %134 : vector<2x1xi1> to vector<2x1xi32>
    %139 = arith.addi %90, %138 : vector<2x1xi32>
    %cst_33 = arith.constant dense<0.000000e+00> : vector<2x128xf32>
    %140 = tpu.matmul %130, %2, %cst_33 {dimension_numbers = #tpu.dot_dimension_numbers<[1], [0], [0], [1], [0, 0, 1, 1], [], []>} : vector<2x16xf32>, vector<16x128xf32>, vector<2x128xf32> -> vector<2x128xf32>
    %141 = vector.extract_strided_slice %140 {offsets = [0, 0], sizes = [2, 64], strides = [1, 1]} : vector<2x128xf32> to vector<2x64xf32>
    %142 = vector.extract_strided_slice %115 {offsets = [0, 0], sizes = [2, 64], strides = [1, 1]} : vector<2x128xf32> to vector<2x64xf32>
    %143 = arith.addf %141, %142 : vector<2x64xf32>
    %144 = arith.addf %143, %32 : vector<2x64xf32>
    %145 = arith.negf %144 : vector<2x64xf32>
    %146 = math.exp %145 : vector<2x64xf32>
    %cst_34 = arith.constant 1.000000e+00 : f32
    %147 = vector.broadcast %cst_34 : f32 to vector<2x64xf32>
    %148 = arith.addf %147, %146 : vector<2x64xf32>
    %149 = arith.divf %147, %148 : vector<2x64xf32>
    %150 = vector.extract_strided_slice %149 {offsets = [0, 0], sizes = [2, 32], strides = [1, 1]} : vector<2x64xf32> to vector<2x32xf32>
    %151 = vector.extract_strided_slice %149 {offsets = [0, 32], sizes = [2, 32], strides = [1, 1]} : vector<2x64xf32> to vector<2x32xf32>
    %152 = vector.extract_strided_slice %140 {offsets = [0, 64], sizes = [2, 32], strides = [1, 1]} : vector<2x128xf32> to vector<2x32xf32>
    %153 = arith.addf %152, %33 : vector<2x32xf32>
    %154 = vector.extract_strided_slice %115 {offsets = [0, 64], sizes = [2, 32], strides = [1, 1]} : vector<2x128xf32> to vector<2x32xf32>
    %155 = arith.addf %154, %34 : vector<2x32xf32>
    %156 = arith.mulf %150, %155 : vector<2x32xf32>
    %157 = arith.addf %153, %156 : vector<2x32xf32>
    %158 = math.tanh %157 : vector<2x32xf32>
    %cst_35 = arith.constant 1.000000e+00 : f32
    %159 = vector.broadcast %cst_35 : f32 to vector<2x32xf32>
    %160 = arith.subf %159, %151 : vector<2x32xf32>
    %161 = arith.mulf %160, %158 : vector<2x32xf32>
    %162 = arith.mulf %151, %114 : vector<2x32xf32>
    %163 = arith.addf %161, %162 : vector<2x32xf32>
    %cst_36 = arith.constant dense<0.000000e+00> : vector<2x128xf32>
    %164 = tpu.matmul %163, %1, %cst_36 {dimension_numbers = #tpu.dot_dimension_numbers<[1], [0], [0], [1], [0, 0, 1, 1], [], []>} : vector<2x32xf32>, vector<32x128xf32>, vector<2x128xf32> -> vector<2x128xf32>
    %165 = vector.extract_strided_slice %164 {offsets = [0, 96], sizes = [2, 16], strides = [1, 1]} : vector<2x128xf32> to vector<2x16xf32>
    %166 = vector.extract_strided_slice %25 {offsets = [0, 32], sizes = [2, 16], strides = [1, 1]} : vector<2x128xf32> to vector<2x16xf32>
    %167 = arith.addf %165, %166 : vector<2x16xf32>
    %cst_37 = arith.constant dense<0xFF800000> : vector<2xf32>
    %168 = vector.multi_reduction <maximumf>, %167, %cst_37 [1] : vector<2x16xf32> to vector<2xf32>
    %169 = vector.shape_cast %168 : vector<2xf32> to vector<2x1xf32>
    %170 = vector.broadcast %169 : vector<2x1xf32> to vector<2x16xf32>
    %171 = arith.cmpf oge, %167, %170 : vector<2x16xf32>
    %c16_i32_38 = arith.constant 16 : i32
    %172 = vector.broadcast %c16_i32_38 : i32 to vector<2x16xi32>
    %173 = arith.select %171, %35, %172 : vector<2x16xi1>, vector<2x16xi32>
    %cst_39 = arith.constant dense<2147483647> : vector<2xi32>
    %174 = vector.multi_reduction <minsi>, %173, %cst_39 [1] : vector<2x16xi32> to vector<2xi32>
    %175 = vector.shape_cast %174 : vector<2xi32> to vector<2x1xi32>
    %176 = vector.broadcast %175 : vector<2x1xi32> to vector<2x16xi32>
    %177 = arith.cmpi eq, %35, %176 : vector<2x16xi32>
    %178 = arith.extui %177 : vector<2x16xi1> to vector<2x16xi32>
    %179 = arith.sitofp %178 : vector<2x16xi32> to vector<2x16xf32>
    %c3_i32_40 = arith.constant 3 : i32
    %180 = vector.broadcast %c3_i32_40 : i32 to vector<2x1xi32>
    %181 = arith.cmpi eq, %175, %180 : vector<2x1xi32>
    %182 = arith.ori %133, %181 : vector<2x1xi1>
    %cst_41 = arith.constant dense<true> : vector<2x1xi1>
    %183 = arith.xori %182, %cst_41 : vector<2x1xi1>
    %184 = vector.shape_cast %183 : vector<2x1xi1> to vector<2x1xi1>
    %185 = vector.broadcast %184 : vector<2x1xi1> to vector<2x16xi1>
    %186 = arith.select %185, %179, %39 : vector<2x16xi1>, vector<2x16xf32>
    %187 = arith.extui %183 : vector<2x1xi1> to vector<2x1xi32>
    %188 = arith.addi %139, %187 : vector<2x1xi32>
    %cst_42 = arith.constant dense<0.000000e+00> : vector<2x128xf32>
    %189 = tpu.matmul %179, %2, %cst_42 {dimension_numbers = #tpu.dot_dimension_numbers<[1], [0], [0], [1], [0, 0, 1, 1], [], []>} : vector<2x16xf32>, vector<16x128xf32>, vector<2x128xf32> -> vector<2x128xf32>
    %190 = vector.extract_strided_slice %189 {offsets = [0, 0], sizes = [2, 64], strides = [1, 1]} : vector<2x128xf32> to vector<2x64xf32>
    %191 = vector.extract_strided_slice %164 {offsets = [0, 0], sizes = [2, 64], strides = [1, 1]} : vector<2x128xf32> to vector<2x64xf32>
    %192 = arith.addf %190, %191 : vector<2x64xf32>
    %193 = arith.addf %192, %32 : vector<2x64xf32>
    %194 = arith.negf %193 : vector<2x64xf32>
    %195 = math.exp %194 : vector<2x64xf32>
    %cst_43 = arith.constant 1.000000e+00 : f32
    %196 = vector.broadcast %cst_43 : f32 to vector<2x64xf32>
    %197 = arith.addf %196, %195 : vector<2x64xf32>
    %198 = arith.divf %196, %197 : vector<2x64xf32>
    %199 = vector.extract_strided_slice %198 {offsets = [0, 0], sizes = [2, 32], strides = [1, 1]} : vector<2x64xf32> to vector<2x32xf32>
    %200 = vector.extract_strided_slice %198 {offsets = [0, 32], sizes = [2, 32], strides = [1, 1]} : vector<2x64xf32> to vector<2x32xf32>
    %201 = vector.extract_strided_slice %189 {offsets = [0, 64], sizes = [2, 32], strides = [1, 1]} : vector<2x128xf32> to vector<2x32xf32>
    %202 = arith.addf %201, %33 : vector<2x32xf32>
    %203 = vector.extract_strided_slice %164 {offsets = [0, 64], sizes = [2, 32], strides = [1, 1]} : vector<2x128xf32> to vector<2x32xf32>
    %204 = arith.addf %203, %34 : vector<2x32xf32>
    %205 = arith.mulf %199, %204 : vector<2x32xf32>
    %206 = arith.addf %202, %205 : vector<2x32xf32>
    %207 = math.tanh %206 : vector<2x32xf32>
    %cst_44 = arith.constant 1.000000e+00 : f32
    %208 = vector.broadcast %cst_44 : f32 to vector<2x32xf32>
    %209 = arith.subf %208, %200 : vector<2x32xf32>
    %210 = arith.mulf %209, %207 : vector<2x32xf32>
    %211 = arith.mulf %200, %163 : vector<2x32xf32>
    %212 = arith.addf %210, %211 : vector<2x32xf32>
    %cst_45 = arith.constant dense<0.000000e+00> : vector<2x128xf32>
    %213 = tpu.matmul %212, %1, %cst_45 {dimension_numbers = #tpu.dot_dimension_numbers<[1], [0], [0], [1], [0, 0, 1, 1], [], []>} : vector<2x32xf32>, vector<32x128xf32>, vector<2x128xf32> -> vector<2x128xf32>
    %214 = vector.extract_strided_slice %213 {offsets = [0, 96], sizes = [2, 16], strides = [1, 1]} : vector<2x128xf32> to vector<2x16xf32>
    %215 = vector.extract_strided_slice %25 {offsets = [0, 48], sizes = [2, 16], strides = [1, 1]} : vector<2x128xf32> to vector<2x16xf32>
    %216 = arith.addf %214, %215 : vector<2x16xf32>
    %cst_46 = arith.constant dense<0xFF800000> : vector<2xf32>
    %217 = vector.multi_reduction <maximumf>, %216, %cst_46 [1] : vector<2x16xf32> to vector<2xf32>
    %218 = vector.shape_cast %217 : vector<2xf32> to vector<2x1xf32>
    %219 = vector.broadcast %218 : vector<2x1xf32> to vector<2x16xf32>
    %220 = arith.cmpf oge, %216, %219 : vector<2x16xf32>
    %c16_i32_47 = arith.constant 16 : i32
    %221 = vector.broadcast %c16_i32_47 : i32 to vector<2x16xi32>
    %222 = arith.select %220, %35, %221 : vector<2x16xi1>, vector<2x16xi32>
    %cst_48 = arith.constant dense<2147483647> : vector<2xi32>
    %223 = vector.multi_reduction <minsi>, %222, %cst_48 [1] : vector<2x16xi32> to vector<2xi32>
    %224 = vector.shape_cast %223 : vector<2xi32> to vector<2x1xi32>
    %225 = vector.broadcast %224 : vector<2x1xi32> to vector<2x16xi32>
    %226 = arith.cmpi eq, %35, %225 : vector<2x16xi32>
    %227 = arith.extui %226 : vector<2x16xi1> to vector<2x16xi32>
    %228 = arith.sitofp %227 : vector<2x16xi32> to vector<2x16xf32>
    %c3_i32_49 = arith.constant 3 : i32
    %229 = vector.broadcast %c3_i32_49 : i32 to vector<2x1xi32>
    %230 = arith.cmpi eq, %224, %229 : vector<2x1xi32>
    %231 = arith.ori %182, %230 : vector<2x1xi1>
    %cst_50 = arith.constant dense<true> : vector<2x1xi1>
    %232 = arith.xori %231, %cst_50 : vector<2x1xi1>
    %233 = vector.shape_cast %232 : vector<2x1xi1> to vector<2x1xi1>
    %234 = vector.broadcast %233 : vector<2x1xi1> to vector<2x16xi1>
    %235 = arith.select %234, %228, %39 : vector<2x16xi1>, vector<2x16xf32>
    %236 = arith.extui %232 : vector<2x1xi1> to vector<2x1xi32>
    %237 = arith.addi %188, %236 : vector<2x1xi32>
    %cst_51 = arith.constant dense<0.000000e+00> : vector<2x128xf32>
    %238 = tpu.matmul %228, %2, %cst_51 {dimension_numbers = #tpu.dot_dimension_numbers<[1], [0], [0], [1], [0, 0, 1, 1], [], []>} : vector<2x16xf32>, vector<16x128xf32>, vector<2x128xf32> -> vector<2x128xf32>
    %239 = vector.extract_strided_slice %238 {offsets = [0, 0], sizes = [2, 64], strides = [1, 1]} : vector<2x128xf32> to vector<2x64xf32>
    %240 = vector.extract_strided_slice %213 {offsets = [0, 0], sizes = [2, 64], strides = [1, 1]} : vector<2x128xf32> to vector<2x64xf32>
    %241 = arith.addf %239, %240 : vector<2x64xf32>
    %242 = arith.addf %241, %32 : vector<2x64xf32>
    %243 = arith.negf %242 : vector<2x64xf32>
    %244 = math.exp %243 : vector<2x64xf32>
    %cst_52 = arith.constant 1.000000e+00 : f32
    %245 = vector.broadcast %cst_52 : f32 to vector<2x64xf32>
    %246 = arith.addf %245, %244 : vector<2x64xf32>
    %247 = arith.divf %245, %246 : vector<2x64xf32>
    %248 = vector.extract_strided_slice %247 {offsets = [0, 0], sizes = [2, 32], strides = [1, 1]} : vector<2x64xf32> to vector<2x32xf32>
    %249 = vector.extract_strided_slice %247 {offsets = [0, 32], sizes = [2, 32], strides = [1, 1]} : vector<2x64xf32> to vector<2x32xf32>
    %250 = vector.extract_strided_slice %238 {offsets = [0, 64], sizes = [2, 32], strides = [1, 1]} : vector<2x128xf32> to vector<2x32xf32>
    %251 = arith.addf %250, %33 : vector<2x32xf32>
    %252 = vector.extract_strided_slice %213 {offsets = [0, 64], sizes = [2, 32], strides = [1, 1]} : vector<2x128xf32> to vector<2x32xf32>
    %253 = arith.addf %252, %34 : vector<2x32xf32>
    %254 = arith.mulf %248, %253 : vector<2x32xf32>
    %255 = arith.addf %251, %254 : vector<2x32xf32>
    %256 = math.tanh %255 : vector<2x32xf32>
    %cst_53 = arith.constant 1.000000e+00 : f32
    %257 = vector.broadcast %cst_53 : f32 to vector<2x32xf32>
    %258 = arith.subf %257, %249 : vector<2x32xf32>
    %259 = arith.mulf %258, %256 : vector<2x32xf32>
    %260 = arith.mulf %249, %212 : vector<2x32xf32>
    %261 = arith.addf %259, %260 : vector<2x32xf32>
    %cst_54 = arith.constant dense<0.000000e+00> : vector<2x128xf32>
    %262 = tpu.matmul %261, %1, %cst_54 {dimension_numbers = #tpu.dot_dimension_numbers<[1], [0], [0], [1], [0, 0, 1, 1], [], []>} : vector<2x32xf32>, vector<32x128xf32>, vector<2x128xf32> -> vector<2x128xf32>
    %263 = vector.extract_strided_slice %262 {offsets = [0, 96], sizes = [2, 16], strides = [1, 1]} : vector<2x128xf32> to vector<2x16xf32>
    %264 = vector.extract_strided_slice %25 {offsets = [0, 64], sizes = [2, 16], strides = [1, 1]} : vector<2x128xf32> to vector<2x16xf32>
    %265 = arith.addf %263, %264 : vector<2x16xf32>
    %cst_55 = arith.constant dense<0xFF800000> : vector<2xf32>
    %266 = vector.multi_reduction <maximumf>, %265, %cst_55 [1] : vector<2x16xf32> to vector<2xf32>
    %267 = vector.shape_cast %266 : vector<2xf32> to vector<2x1xf32>
    %268 = vector.broadcast %267 : vector<2x1xf32> to vector<2x16xf32>
    %269 = arith.cmpf oge, %265, %268 : vector<2x16xf32>
    %c16_i32_56 = arith.constant 16 : i32
    %270 = vector.broadcast %c16_i32_56 : i32 to vector<2x16xi32>
    %271 = arith.select %269, %35, %270 : vector<2x16xi1>, vector<2x16xi32>
    %cst_57 = arith.constant dense<2147483647> : vector<2xi32>
    %272 = vector.multi_reduction <minsi>, %271, %cst_57 [1] : vector<2x16xi32> to vector<2xi32>
    %273 = vector.shape_cast %272 : vector<2xi32> to vector<2x1xi32>
    %274 = vector.broadcast %273 : vector<2x1xi32> to vector<2x16xi32>
    %275 = arith.cmpi eq, %35, %274 : vector<2x16xi32>
    %276 = arith.extui %275 : vector<2x16xi1> to vector<2x16xi32>
    %277 = arith.sitofp %276 : vector<2x16xi32> to vector<2x16xf32>
    %c3_i32_58 = arith.constant 3 : i32
    %278 = vector.broadcast %c3_i32_58 : i32 to vector<2x1xi32>
    %279 = arith.cmpi eq, %273, %278 : vector<2x1xi32>
    %280 = arith.ori %231, %279 : vector<2x1xi1>
    %cst_59 = arith.constant dense<true> : vector<2x1xi1>
    %281 = arith.xori %280, %cst_59 : vector<2x1xi1>
    %282 = vector.shape_cast %281 : vector<2x1xi1> to vector<2x1xi1>
    %283 = vector.broadcast %282 : vector<2x1xi1> to vector<2x16xi1>
    %284 = arith.select %283, %277, %39 : vector<2x16xi1>, vector<2x16xf32>
    %285 = arith.extui %281 : vector<2x1xi1> to vector<2x1xi32>
    %286 = arith.addi %237, %285 : vector<2x1xi32>
    %cst_60 = arith.constant dense<0.000000e+00> : vector<2x128xf32>
    %287 = tpu.matmul %277, %2, %cst_60 {dimension_numbers = #tpu.dot_dimension_numbers<[1], [0], [0], [1], [0, 0, 1, 1], [], []>} : vector<2x16xf32>, vector<16x128xf32>, vector<2x128xf32> -> vector<2x128xf32>
    %288 = vector.extract_strided_slice %287 {offsets = [0, 0], sizes = [2, 64], strides = [1, 1]} : vector<2x128xf32> to vector<2x64xf32>
    %289 = vector.extract_strided_slice %262 {offsets = [0, 0], sizes = [2, 64], strides = [1, 1]} : vector<2x128xf32> to vector<2x64xf32>
    %290 = arith.addf %288, %289 : vector<2x64xf32>
    %291 = arith.addf %290, %32 : vector<2x64xf32>
    %292 = arith.negf %291 : vector<2x64xf32>
    %293 = math.exp %292 : vector<2x64xf32>
    %cst_61 = arith.constant 1.000000e+00 : f32
    %294 = vector.broadcast %cst_61 : f32 to vector<2x64xf32>
    %295 = arith.addf %294, %293 : vector<2x64xf32>
    %296 = arith.divf %294, %295 : vector<2x64xf32>
    %297 = vector.extract_strided_slice %296 {offsets = [0, 0], sizes = [2, 32], strides = [1, 1]} : vector<2x64xf32> to vector<2x32xf32>
    %298 = vector.extract_strided_slice %296 {offsets = [0, 32], sizes = [2, 32], strides = [1, 1]} : vector<2x64xf32> to vector<2x32xf32>
    %299 = vector.extract_strided_slice %287 {offsets = [0, 64], sizes = [2, 32], strides = [1, 1]} : vector<2x128xf32> to vector<2x32xf32>
    %300 = arith.addf %299, %33 : vector<2x32xf32>
    %301 = vector.extract_strided_slice %262 {offsets = [0, 64], sizes = [2, 32], strides = [1, 1]} : vector<2x128xf32> to vector<2x32xf32>
    %302 = arith.addf %301, %34 : vector<2x32xf32>
    %303 = arith.mulf %297, %302 : vector<2x32xf32>
    %304 = arith.addf %300, %303 : vector<2x32xf32>
    %305 = math.tanh %304 : vector<2x32xf32>
    %cst_62 = arith.constant 1.000000e+00 : f32
    %306 = vector.broadcast %cst_62 : f32 to vector<2x32xf32>
    %307 = arith.subf %306, %298 : vector<2x32xf32>
    %308 = arith.mulf %307, %305 : vector<2x32xf32>
    %309 = arith.mulf %298, %261 : vector<2x32xf32>
    %310 = arith.addf %308, %309 : vector<2x32xf32>
    %cst_63 = arith.constant dense<0.000000e+00> : vector<2x128xf32>
    %311 = tpu.matmul %310, %1, %cst_63 {dimension_numbers = #tpu.dot_dimension_numbers<[1], [0], [0], [1], [0, 0, 1, 1], [], []>} : vector<2x32xf32>, vector<32x128xf32>, vector<2x128xf32> -> vector<2x128xf32>
    %312 = vector.extract_strided_slice %311 {offsets = [0, 96], sizes = [2, 16], strides = [1, 1]} : vector<2x128xf32> to vector<2x16xf32>
    %313 = vector.extract_strided_slice %25 {offsets = [0, 80], sizes = [2, 16], strides = [1, 1]} : vector<2x128xf32> to vector<2x16xf32>
    %314 = arith.addf %312, %313 : vector<2x16xf32>
    %cst_64 = arith.constant dense<0xFF800000> : vector<2xf32>
    %315 = vector.multi_reduction <maximumf>, %314, %cst_64 [1] : vector<2x16xf32> to vector<2xf32>
    %316 = vector.shape_cast %315 : vector<2xf32> to vector<2x1xf32>
    %317 = vector.broadcast %316 : vector<2x1xf32> to vector<2x16xf32>
    %318 = arith.cmpf oge, %314, %317 : vector<2x16xf32>
    %c16_i32_65 = arith.constant 16 : i32
    %319 = vector.broadcast %c16_i32_65 : i32 to vector<2x16xi32>
    %320 = arith.select %318, %35, %319 : vector<2x16xi1>, vector<2x16xi32>
    %cst_66 = arith.constant dense<2147483647> : vector<2xi32>
    %321 = vector.multi_reduction <minsi>, %320, %cst_66 [1] : vector<2x16xi32> to vector<2xi32>
    %322 = vector.shape_cast %321 : vector<2xi32> to vector<2x1xi32>
    %323 = vector.broadcast %322 : vector<2x1xi32> to vector<2x16xi32>
    %324 = arith.cmpi eq, %35, %323 : vector<2x16xi32>
    %325 = arith.extui %324 : vector<2x16xi1> to vector<2x16xi32>
    %326 = arith.sitofp %325 : vector<2x16xi32> to vector<2x16xf32>
    %c3_i32_67 = arith.constant 3 : i32
    %327 = vector.broadcast %c3_i32_67 : i32 to vector<2x1xi32>
    %328 = arith.cmpi eq, %322, %327 : vector<2x1xi32>
    %329 = arith.ori %280, %328 : vector<2x1xi1>
    %cst_68 = arith.constant dense<true> : vector<2x1xi1>
    %330 = arith.xori %329, %cst_68 : vector<2x1xi1>
    %331 = vector.shape_cast %330 : vector<2x1xi1> to vector<2x1xi1>
    %332 = vector.broadcast %331 : vector<2x1xi1> to vector<2x16xi1>
    %333 = arith.select %332, %326, %39 : vector<2x16xi1>, vector<2x16xf32>
    %334 = arith.extui %330 : vector<2x1xi1> to vector<2x1xi32>
    %335 = arith.addi %286, %334 : vector<2x1xi32>
    %cst_69 = arith.constant dense<0.000000e+00> : vector<2x128xf32>
    %336 = tpu.matmul %326, %2, %cst_69 {dimension_numbers = #tpu.dot_dimension_numbers<[1], [0], [0], [1], [0, 0, 1, 1], [], []>} : vector<2x16xf32>, vector<16x128xf32>, vector<2x128xf32> -> vector<2x128xf32>
    %337 = vector.extract_strided_slice %336 {offsets = [0, 0], sizes = [2, 64], strides = [1, 1]} : vector<2x128xf32> to vector<2x64xf32>
    %338 = vector.extract_strided_slice %311 {offsets = [0, 0], sizes = [2, 64], strides = [1, 1]} : vector<2x128xf32> to vector<2x64xf32>
    %339 = arith.addf %337, %338 : vector<2x64xf32>
    %340 = arith.addf %339, %32 : vector<2x64xf32>
    %341 = arith.negf %340 : vector<2x64xf32>
    %342 = math.exp %341 : vector<2x64xf32>
    %cst_70 = arith.constant 1.000000e+00 : f32
    %343 = vector.broadcast %cst_70 : f32 to vector<2x64xf32>
    %344 = arith.addf %343, %342 : vector<2x64xf32>
    %345 = arith.divf %343, %344 : vector<2x64xf32>
    %346 = vector.extract_strided_slice %345 {offsets = [0, 0], sizes = [2, 32], strides = [1, 1]} : vector<2x64xf32> to vector<2x32xf32>
    %347 = vector.extract_strided_slice %345 {offsets = [0, 32], sizes = [2, 32], strides = [1, 1]} : vector<2x64xf32> to vector<2x32xf32>
    %348 = vector.extract_strided_slice %336 {offsets = [0, 64], sizes = [2, 32], strides = [1, 1]} : vector<2x128xf32> to vector<2x32xf32>
    %349 = arith.addf %348, %33 : vector<2x32xf32>
    %350 = vector.extract_strided_slice %311 {offsets = [0, 64], sizes = [2, 32], strides = [1, 1]} : vector<2x128xf32> to vector<2x32xf32>
    %351 = arith.addf %350, %34 : vector<2x32xf32>
    %352 = arith.mulf %346, %351 : vector<2x32xf32>
    %353 = arith.addf %349, %352 : vector<2x32xf32>
    %354 = math.tanh %353 : vector<2x32xf32>
    %cst_71 = arith.constant 1.000000e+00 : f32
    %355 = vector.broadcast %cst_71 : f32 to vector<2x32xf32>
    %356 = arith.subf %355, %347 : vector<2x32xf32>
    %357 = arith.mulf %356, %354 : vector<2x32xf32>
    %358 = arith.mulf %347, %310 : vector<2x32xf32>
    %359 = arith.addf %357, %358 : vector<2x32xf32>
    %cst_72 = arith.constant dense<0.000000e+00> : vector<2x128xf32>
    %360 = tpu.matmul %359, %1, %cst_72 {dimension_numbers = #tpu.dot_dimension_numbers<[1], [0], [0], [1], [0, 0, 1, 1], [], []>} : vector<2x32xf32>, vector<32x128xf32>, vector<2x128xf32> -> vector<2x128xf32>
    %361 = vector.extract_strided_slice %360 {offsets = [0, 96], sizes = [2, 16], strides = [1, 1]} : vector<2x128xf32> to vector<2x16xf32>
    %362 = vector.extract_strided_slice %25 {offsets = [0, 96], sizes = [2, 16], strides = [1, 1]} : vector<2x128xf32> to vector<2x16xf32>
    %363 = arith.addf %361, %362 : vector<2x16xf32>
    %cst_73 = arith.constant dense<0xFF800000> : vector<2xf32>
    %364 = vector.multi_reduction <maximumf>, %363, %cst_73 [1] : vector<2x16xf32> to vector<2xf32>
    %365 = vector.shape_cast %364 : vector<2xf32> to vector<2x1xf32>
    %366 = vector.broadcast %365 : vector<2x1xf32> to vector<2x16xf32>
    %367 = arith.cmpf oge, %363, %366 : vector<2x16xf32>
    %c16_i32_74 = arith.constant 16 : i32
    %368 = vector.broadcast %c16_i32_74 : i32 to vector<2x16xi32>
    %369 = arith.select %367, %35, %368 : vector<2x16xi1>, vector<2x16xi32>
    %cst_75 = arith.constant dense<2147483647> : vector<2xi32>
    %370 = vector.multi_reduction <minsi>, %369, %cst_75 [1] : vector<2x16xi32> to vector<2xi32>
    %371 = vector.shape_cast %370 : vector<2xi32> to vector<2x1xi32>
    %372 = vector.broadcast %371 : vector<2x1xi32> to vector<2x16xi32>
    %373 = arith.cmpi eq, %35, %372 : vector<2x16xi32>
    %374 = arith.extui %373 : vector<2x16xi1> to vector<2x16xi32>
    %375 = arith.sitofp %374 : vector<2x16xi32> to vector<2x16xf32>
    %c3_i32_76 = arith.constant 3 : i32
    %376 = vector.broadcast %c3_i32_76 : i32 to vector<2x1xi32>
    %377 = arith.cmpi eq, %371, %376 : vector<2x1xi32>
    %378 = arith.ori %329, %377 : vector<2x1xi1>
    %cst_77 = arith.constant dense<true> : vector<2x1xi1>
    %379 = arith.xori %378, %cst_77 : vector<2x1xi1>
    %380 = vector.shape_cast %379 : vector<2x1xi1> to vector<2x1xi1>
    %381 = vector.broadcast %380 : vector<2x1xi1> to vector<2x16xi1>
    %382 = arith.select %381, %375, %39 : vector<2x16xi1>, vector<2x16xf32>
    %383 = arith.extui %379 : vector<2x1xi1> to vector<2x1xi32>
    %384 = arith.addi %335, %383 : vector<2x1xi32>
    %cst_78 = arith.constant dense<0.000000e+00> : vector<2x128xf32>
    %385 = tpu.matmul %375, %2, %cst_78 {dimension_numbers = #tpu.dot_dimension_numbers<[1], [0], [0], [1], [0, 0, 1, 1], [], []>} : vector<2x16xf32>, vector<16x128xf32>, vector<2x128xf32> -> vector<2x128xf32>
    %386 = vector.extract_strided_slice %385 {offsets = [0, 0], sizes = [2, 64], strides = [1, 1]} : vector<2x128xf32> to vector<2x64xf32>
    %387 = vector.extract_strided_slice %360 {offsets = [0, 0], sizes = [2, 64], strides = [1, 1]} : vector<2x128xf32> to vector<2x64xf32>
    %388 = arith.addf %386, %387 : vector<2x64xf32>
    %389 = arith.addf %388, %32 : vector<2x64xf32>
    %390 = arith.negf %389 : vector<2x64xf32>
    %391 = math.exp %390 : vector<2x64xf32>
    %cst_79 = arith.constant 1.000000e+00 : f32
    %392 = vector.broadcast %cst_79 : f32 to vector<2x64xf32>
    %393 = arith.addf %392, %391 : vector<2x64xf32>
    %394 = arith.divf %392, %393 : vector<2x64xf32>
    %395 = vector.extract_strided_slice %394 {offsets = [0, 0], sizes = [2, 32], strides = [1, 1]} : vector<2x64xf32> to vector<2x32xf32>
    %396 = vector.extract_strided_slice %394 {offsets = [0, 32], sizes = [2, 32], strides = [1, 1]} : vector<2x64xf32> to vector<2x32xf32>
    %397 = vector.extract_strided_slice %385 {offsets = [0, 64], sizes = [2, 32], strides = [1, 1]} : vector<2x128xf32> to vector<2x32xf32>
    %398 = arith.addf %397, %33 : vector<2x32xf32>
    %399 = vector.extract_strided_slice %360 {offsets = [0, 64], sizes = [2, 32], strides = [1, 1]} : vector<2x128xf32> to vector<2x32xf32>
    %400 = arith.addf %399, %34 : vector<2x32xf32>
    %401 = arith.mulf %395, %400 : vector<2x32xf32>
    %402 = arith.addf %398, %401 : vector<2x32xf32>
    %403 = math.tanh %402 : vector<2x32xf32>
    %cst_80 = arith.constant 1.000000e+00 : f32
    %404 = vector.broadcast %cst_80 : f32 to vector<2x32xf32>
    %405 = arith.subf %404, %396 : vector<2x32xf32>
    %406 = arith.mulf %405, %403 : vector<2x32xf32>
    %407 = arith.mulf %396, %359 : vector<2x32xf32>
    %408 = arith.addf %406, %407 : vector<2x32xf32>
    %cst_81 = arith.constant dense<0.000000e+00> : vector<2x128xf32>
    %409 = tpu.matmul %408, %1, %cst_81 {dimension_numbers = #tpu.dot_dimension_numbers<[1], [0], [0], [1], [0, 0, 1, 1], [], []>} : vector<2x32xf32>, vector<32x128xf32>, vector<2x128xf32> -> vector<2x128xf32>
    %410 = vector.extract_strided_slice %409 {offsets = [0, 96], sizes = [2, 16], strides = [1, 1]} : vector<2x128xf32> to vector<2x16xf32>
    %411 = vector.extract_strided_slice %25 {offsets = [0, 112], sizes = [2, 16], strides = [1, 1]} : vector<2x128xf32> to vector<2x16xf32>
    %412 = arith.addf %410, %411 : vector<2x16xf32>
    %cst_82 = arith.constant dense<0xFF800000> : vector<2xf32>
    %413 = vector.multi_reduction <maximumf>, %412, %cst_82 [1] : vector<2x16xf32> to vector<2xf32>
    %414 = vector.shape_cast %413 : vector<2xf32> to vector<2x1xf32>
    %415 = vector.broadcast %414 : vector<2x1xf32> to vector<2x16xf32>
    %416 = arith.cmpf oge, %412, %415 : vector<2x16xf32>
    %c16_i32_83 = arith.constant 16 : i32
    %417 = vector.broadcast %c16_i32_83 : i32 to vector<2x16xi32>
    %418 = arith.select %416, %35, %417 : vector<2x16xi1>, vector<2x16xi32>
    %cst_84 = arith.constant dense<2147483647> : vector<2xi32>
    %419 = vector.multi_reduction <minsi>, %418, %cst_84 [1] : vector<2x16xi32> to vector<2xi32>
    %420 = vector.shape_cast %419 : vector<2xi32> to vector<2x1xi32>
    %421 = vector.broadcast %420 : vector<2x1xi32> to vector<2x16xi32>
    %422 = arith.cmpi eq, %35, %421 : vector<2x16xi32>
    %423 = arith.extui %422 : vector<2x16xi1> to vector<2x16xi32>
    %424 = arith.sitofp %423 : vector<2x16xi32> to vector<2x16xf32>
    %false_85 = arith.constant false
    %425 = vector.broadcast %false_85 : i1 to vector<2x1xi1>
    %426 = vector.shape_cast %425 : vector<2x1xi1> to vector<2x1xi1>
    %427 = vector.broadcast %426 : vector<2x1xi1> to vector<2x16xi1>
    %428 = arith.select %427, %424, %39 : vector<2x16xi1>, vector<2x16xf32>
    %429 = arith.extui %425 : vector<2x1xi1> to vector<2x1xi32>
    %430 = arith.addi %384, %429 : vector<2x1xi32>
    %431 = tpu.concatenate %88, %137, %186, %235, %284, %333, %382, %428 in 1 : vector<2x16xf32>, vector<2x16xf32>, vector<2x16xf32>, vector<2x16xf32>, vector<2x16xf32>, vector<2x16xf32>, vector<2x16xf32>, vector<2x16xf32> -> vector<2x128xf32>
    %c0_86 = arith.constant 0 : index
    %c0_87 = arith.constant 0 : index
    %432 = vector.load %arg4[%c0_86, %c0_87] : memref<2x128xf32, #tpu.memory_space<vmem>>, vector<2x128xf32>
    tpu.vector_store %arg4[%c0_86, %c0_87], %431 {strides = array<i32>} : memref<2x128xf32, #tpu.memory_space<vmem>>, vector<2x128xf32>,
    %c1_i32 = arith.constant 1 : i32
    %433 = vector.broadcast %c1_i32 : i32 to vector<2x1xi32>
    %434 = arith.addi %430, %433 : vector<2x1xi32>
    %c0_88 = arith.constant 0 : index
    %c0_89 = arith.constant 0 : index
    %435 = vector.load %arg5[%c0_88, %c0_89] : memref<2x1xi32, #tpu.memory_space<vmem>>, vector<2x1xi32>
    tpu.vector_store %arg5[%c0_88, %c0_89], %434 {strides = array<i32>} : memref<2x1xi32, #tpu.memory_space<vmem>>, vector<2x1xi32>,
    %436 = vector.extract_strided_slice %6 {offsets = [3, 0], sizes = [1, 128], strides = [1, 1]} : vector<8x128xf32> to vector<1x128xf32>
    %437 = vector.shape_cast %436 : vector<1x128xf32> to vector<1x128xf32>
    %438 = vector.broadcast %437 : vector<1x128xf32> to vector<2x128xf32>
    %439 = vector.extract_strided_slice %438 {offsets = [0, 0], sizes = [2, 64], strides = [1, 1]} : vector<2x128xf32> to vector<2x64xf32>
    %440 = vector.extract_strided_slice %438 {offsets = [0, 64], sizes = [2, 32], strides = [1, 1]} : vector<2x128xf32> to vector<2x32xf32>
    %441 = vector.extract_strided_slice %438 {offsets = [0, 96], sizes = [2, 32], strides = [1, 1]} : vector<2x128xf32> to vector<2x32xf32>
    %442 = tpu.concatenate %88, %137, %186, %235, %284, %333, %382 in 0 : vector<2x16xf32>, vector<2x16xf32>, vector<2x16xf32>, vector<2x16xf32>, vector<2x16xf32>, vector<2x16xf32>, vector<2x16xf32> -> vector<14x16xf32>
    %cst_90 = arith.constant dense<0.000000e+00> : vector<14x128xf32>
    %443 = tpu.matmul %442, %3, %cst_90 {dimension_numbers = #tpu.dot_dimension_numbers<[1], [0], [0], [1], [0, 0, 1, 1], [], []>} : vector<14x16xf32>, vector<16x128xf32>, vector<14x128xf32> -> vector<14x128xf32>
    %cst_91 = arith.constant 0.000000e+00 : f32
    %444 = vector.broadcast %cst_91 : f32 to vector<2x32xf32>
    %445 = vector.extract_strided_slice %443 {offsets = [0, 0], sizes = [2, 128], strides = [1, 1]} : vector<14x128xf32> to vector<2x128xf32>
    %cst_92 = arith.constant 0.000000e+00 : f32
    %446 = vector.broadcast %cst_92 : f32 to vector<2x96xf32>
    %447 = vector.extract_strided_slice %445 {offsets = [0, 0], sizes = [2, 64], strides = [1, 1]} : vector<2x128xf32> to vector<2x64xf32>
    %448 = vector.extract_strided_slice %446 {offsets = [0, 0], sizes = [2, 64], strides = [1, 1]} : vector<2x96xf32> to vector<2x64xf32>
    %449 = arith.addf %447, %448 : vector<2x64xf32>
    %450 = arith.addf %449, %439 : vector<2x64xf32>
    %451 = arith.negf %450 : vector<2x64xf32>
    %452 = math.exp %451 : vector<2x64xf32>
    %cst_93 = arith.constant 1.000000e+00 : f32
    %453 = vector.broadcast %cst_93 : f32 to vector<2x64xf32>
    %454 = arith.addf %453, %452 : vector<2x64xf32>
    %455 = arith.divf %453, %454 : vector<2x64xf32>
    %456 = vector.extract_strided_slice %455 {offsets = [0, 0], sizes = [2, 32], strides = [1, 1]} : vector<2x64xf32> to vector<2x32xf32>
    %457 = vector.extract_strided_slice %455 {offsets = [0, 32], sizes = [2, 32], strides = [1, 1]} : vector<2x64xf32> to vector<2x32xf32>
    %458 = vector.extract_strided_slice %445 {offsets = [0, 64], sizes = [2, 32], strides = [1, 1]} : vector<2x128xf32> to vector<2x32xf32>
    %459 = arith.addf %458, %440 : vector<2x32xf32>
    %460 = vector.extract_strided_slice %446 {offsets = [0, 64], sizes = [2, 32], strides = [1, 1]} : vector<2x96xf32> to vector<2x32xf32>
    %461 = arith.addf %460, %441 : vector<2x32xf32>
    %462 = arith.mulf %456, %461 : vector<2x32xf32>
    %463 = arith.addf %459, %462 : vector<2x32xf32>
    %464 = math.tanh %463 : vector<2x32xf32>
    %cst_94 = arith.constant 1.000000e+00 : f32
    %465 = vector.broadcast %cst_94 : f32 to vector<2x32xf32>
    %466 = arith.subf %465, %457 : vector<2x32xf32>
    %467 = arith.mulf %466, %464 : vector<2x32xf32>
    %468 = arith.mulf %457, %444 : vector<2x32xf32>
    %469 = arith.addf %467, %468 : vector<2x32xf32>
    %470 = vector.shape_cast %85 : vector<2x1xi1> to vector<2x1xi1>
    %471 = vector.broadcast %470 : vector<2x1xi1> to vector<2x32xi1>
    %472 = arith.select %471, %469, %444 : vector<2x32xi1>, vector<2x32xf32>
    %473 = vector.extract_strided_slice %443 {offsets = [2, 0], sizes = [2, 128], strides = [1, 1]} : vector<14x128xf32> to vector<2x128xf32>
    %cst_95 = arith.constant dense<0.000000e+00> : vector<2x128xf32>
    %474 = tpu.matmul %472, %4, %cst_95 {dimension_numbers = #tpu.dot_dimension_numbers<[1], [0], [0], [1], [0, 0, 1, 1], [], []>} : vector<2x32xf32>, vector<32x128xf32>, vector<2x128xf32> -> vector<2x128xf32>
    %475 = vector.extract_strided_slice %473 {offsets = [0, 0], sizes = [2, 64], strides = [1, 1]} : vector<2x128xf32> to vector<2x64xf32>
    %476 = vector.extract_strided_slice %474 {offsets = [0, 0], sizes = [2, 64], strides = [1, 1]} : vector<2x128xf32> to vector<2x64xf32>
    %477 = arith.addf %475, %476 : vector<2x64xf32>
    %478 = arith.addf %477, %439 : vector<2x64xf32>
    %479 = arith.negf %478 : vector<2x64xf32>
    %480 = math.exp %479 : vector<2x64xf32>
    %cst_96 = arith.constant 1.000000e+00 : f32
    %481 = vector.broadcast %cst_96 : f32 to vector<2x64xf32>
    %482 = arith.addf %481, %480 : vector<2x64xf32>
    %483 = arith.divf %481, %482 : vector<2x64xf32>
    %484 = vector.extract_strided_slice %483 {offsets = [0, 0], sizes = [2, 32], strides = [1, 1]} : vector<2x64xf32> to vector<2x32xf32>
    %485 = vector.extract_strided_slice %483 {offsets = [0, 32], sizes = [2, 32], strides = [1, 1]} : vector<2x64xf32> to vector<2x32xf32>
    %486 = vector.extract_strided_slice %473 {offsets = [0, 64], sizes = [2, 32], strides = [1, 1]} : vector<2x128xf32> to vector<2x32xf32>
    %487 = arith.addf %486, %440 : vector<2x32xf32>
    %488 = vector.extract_strided_slice %474 {offsets = [0, 64], sizes = [2, 32], strides = [1, 1]} : vector<2x128xf32> to vector<2x32xf32>
    %489 = arith.addf %488, %441 : vector<2x32xf32>
    %490 = arith.mulf %484, %489 : vector<2x32xf32>
    %491 = arith.addf %487, %490 : vector<2x32xf32>
    %492 = math.tanh %491 : vector<2x32xf32>
    %cst_97 = arith.constant 1.000000e+00 : f32
    %493 = vector.broadcast %cst_97 : f32 to vector<2x32xf32>
    %494 = arith.subf %493, %485 : vector<2x32xf32>
    %495 = arith.mulf %494, %492 : vector<2x32xf32>
    %496 = arith.mulf %485, %472 : vector<2x32xf32>
    %497 = arith.addf %495, %496 : vector<2x32xf32>
    %498 = vector.shape_cast %134 : vector<2x1xi1> to vector<2x1xi1>
    %499 = vector.broadcast %498 : vector<2x1xi1> to vector<2x32xi1>
    %500 = arith.select %499, %497, %472 : vector<2x32xi1>, vector<2x32xf32>
    %501 = vector.extract_strided_slice %443 {offsets = [4, 0], sizes = [2, 128], strides = [1, 1]} : vector<14x128xf32> to vector<2x128xf32>
    %cst_98 = arith.constant dense<0.000000e+00> : vector<2x128xf32>
    %502 = tpu.matmul %500, %4, %cst_98 {dimension_numbers = #tpu.dot_dimension_numbers<[1], [0], [0], [1], [0, 0, 1, 1], [], []>} : vector<2x32xf32>, vector<32x128xf32>, vector<2x128xf32> -> vector<2x128xf32>
    %503 = vector.extract_strided_slice %501 {offsets = [0, 0], sizes = [2, 64], strides = [1, 1]} : vector<2x128xf32> to vector<2x64xf32>
    %504 = vector.extract_strided_slice %502 {offsets = [0, 0], sizes = [2, 64], strides = [1, 1]} : vector<2x128xf32> to vector<2x64xf32>
    %505 = arith.addf %503, %504 : vector<2x64xf32>
    %506 = arith.addf %505, %439 : vector<2x64xf32>
    %507 = arith.negf %506 : vector<2x64xf32>
    %508 = math.exp %507 : vector<2x64xf32>
    %cst_99 = arith.constant 1.000000e+00 : f32
    %509 = vector.broadcast %cst_99 : f32 to vector<2x64xf32>
    %510 = arith.addf %509, %508 : vector<2x64xf32>
    %511 = arith.divf %509, %510 : vector<2x64xf32>
    %512 = vector.extract_strided_slice %511 {offsets = [0, 0], sizes = [2, 32], strides = [1, 1]} : vector<2x64xf32> to vector<2x32xf32>
    %513 = vector.extract_strided_slice %511 {offsets = [0, 32], sizes = [2, 32], strides = [1, 1]} : vector<2x64xf32> to vector<2x32xf32>
    %514 = vector.extract_strided_slice %501 {offsets = [0, 64], sizes = [2, 32], strides = [1, 1]} : vector<2x128xf32> to vector<2x32xf32>
    %515 = arith.addf %514, %440 : vector<2x32xf32>
    %516 = vector.extract_strided_slice %502 {offsets = [0, 64], sizes = [2, 32], strides = [1, 1]} : vector<2x128xf32> to vector<2x32xf32>
    %517 = arith.addf %516, %441 : vector<2x32xf32>
    %518 = arith.mulf %512, %517 : vector<2x32xf32>
    %519 = arith.addf %515, %518 : vector<2x32xf32>
    %520 = math.tanh %519 : vector<2x32xf32>
    %cst_100 = arith.constant 1.000000e+00 : f32
    %521 = vector.broadcast %cst_100 : f32 to vector<2x32xf32>
    %522 = arith.subf %521, %513 : vector<2x32xf32>
    %523 = arith.mulf %522, %520 : vector<2x32xf32>
    %524 = arith.mulf %513, %500 : vector<2x32xf32>
    %525 = arith.addf %523, %524 : vector<2x32xf32>
    %526 = vector.shape_cast %183 : vector<2x1xi1> to vector<2x1xi1>
    %527 = vector.broadcast %526 : vector<2x1xi1> to vector<2x32xi1>
    %528 = arith.select %527, %525, %500 : vector<2x32xi1>, vector<2x32xf32>
    %529 = vector.extract_strided_slice %443 {offsets = [6, 0], sizes = [2, 128], strides = [1, 1]} : vector<14x128xf32> to vector<2x128xf32>
    %cst_101 = arith.constant dense<0.000000e+00> : vector<2x128xf32>
    %530 = tpu.matmul %528, %4, %cst_101 {dimension_numbers = #tpu.dot_dimension_numbers<[1], [0], [0], [1], [0, 0, 1, 1], [], []>} : vector<2x32xf32>, vector<32x128xf32>, vector<2x128xf32> -> vector<2x128xf32>
    %531 = vector.extract_strided_slice %529 {offsets = [0, 0], sizes = [2, 64], strides = [1, 1]} : vector<2x128xf32> to vector<2x64xf32>
    %532 = vector.extract_strided_slice %530 {offsets = [0, 0], sizes = [2, 64], strides = [1, 1]} : vector<2x128xf32> to vector<2x64xf32>
    %533 = arith.addf %531, %532 : vector<2x64xf32>
    %534 = arith.addf %533, %439 : vector<2x64xf32>
    %535 = arith.negf %534 : vector<2x64xf32>
    %536 = math.exp %535 : vector<2x64xf32>
    %cst_102 = arith.constant 1.000000e+00 : f32
    %537 = vector.broadcast %cst_102 : f32 to vector<2x64xf32>
    %538 = arith.addf %537, %536 : vector<2x64xf32>
    %539 = arith.divf %537, %538 : vector<2x64xf32>
    %540 = vector.extract_strided_slice %539 {offsets = [0, 0], sizes = [2, 32], strides = [1, 1]} : vector<2x64xf32> to vector<2x32xf32>
    %541 = vector.extract_strided_slice %539 {offsets = [0, 32], sizes = [2, 32], strides = [1, 1]} : vector<2x64xf32> to vector<2x32xf32>
    %542 = vector.extract_strided_slice %529 {offsets = [0, 64], sizes = [2, 32], strides = [1, 1]} : vector<2x128xf32> to vector<2x32xf32>
    %543 = arith.addf %542, %440 : vector<2x32xf32>
    %544 = vector.extract_strided_slice %530 {offsets = [0, 64], sizes = [2, 32], strides = [1, 1]} : vector<2x128xf32> to vector<2x32xf32>
    %545 = arith.addf %544, %441 : vector<2x32xf32>
    %546 = arith.mulf %540, %545 : vector<2x32xf32>
    %547 = arith.addf %543, %546 : vector<2x32xf32>
    %548 = math.tanh %547 : vector<2x32xf32>
    %cst_103 = arith.constant 1.000000e+00 : f32
    %549 = vector.broadcast %cst_103 : f32 to vector<2x32xf32>
    %550 = arith.subf %549, %541 : vector<2x32xf32>
    %551 = arith.mulf %550, %548 : vector<2x32xf32>
    %552 = arith.mulf %541, %528 : vector<2x32xf32>
    %553 = arith.addf %551, %552 : vector<2x32xf32>
    %554 = vector.shape_cast %232 : vector<2x1xi1> to vector<2x1xi1>
    %555 = vector.broadcast %554 : vector<2x1xi1> to vector<2x32xi1>
    %556 = arith.select %555, %553, %528 : vector<2x32xi1>, vector<2x32xf32>
    %557 = vector.extract_strided_slice %443 {offsets = [8, 0], sizes = [2, 128], strides = [1, 1]} : vector<14x128xf32> to vector<2x128xf32>
    %cst_104 = arith.constant dense<0.000000e+00> : vector<2x128xf32>
    %558 = tpu.matmul %556, %4, %cst_104 {dimension_numbers = #tpu.dot_dimension_numbers<[1], [0], [0], [1], [0, 0, 1, 1], [], []>} : vector<2x32xf32>, vector<32x128xf32>, vector<2x128xf32> -> vector<2x128xf32>
    %559 = vector.extract_strided_slice %557 {offsets = [0, 0], sizes = [2, 64], strides = [1, 1]} : vector<2x128xf32> to vector<2x64xf32>
    %560 = vector.extract_strided_slice %558 {offsets = [0, 0], sizes = [2, 64], strides = [1, 1]} : vector<2x128xf32> to vector<2x64xf32>
    %561 = arith.addf %559, %560 : vector<2x64xf32>
    %562 = arith.addf %561, %439 : vector<2x64xf32>
    %563 = arith.negf %562 : vector<2x64xf32>
    %564 = math.exp %563 : vector<2x64xf32>
    %cst_105 = arith.constant 1.000000e+00 : f32
    %565 = vector.broadcast %cst_105 : f32 to vector<2x64xf32>
    %566 = arith.addf %565, %564 : vector<2x64xf32>
    %567 = arith.divf %565, %566 : vector<2x64xf32>
    %568 = vector.extract_strided_slice %567 {offsets = [0, 0], sizes = [2, 32], strides = [1, 1]} : vector<2x64xf32> to vector<2x32xf32>
    %569 = vector.extract_strided_slice %567 {offsets = [0, 32], sizes = [2, 32], strides = [1, 1]} : vector<2x64xf32> to vector<2x32xf32>
    %570 = vector.extract_strided_slice %557 {offsets = [0, 64], sizes = [2, 32], strides = [1, 1]} : vector<2x128xf32> to vector<2x32xf32>
    %571 = arith.addf %570, %440 : vector<2x32xf32>
    %572 = vector.extract_strided_slice %558 {offsets = [0, 64], sizes = [2, 32], strides = [1, 1]} : vector<2x128xf32> to vector<2x32xf32>
    %573 = arith.addf %572, %441 : vector<2x32xf32>
    %574 = arith.mulf %568, %573 : vector<2x32xf32>
    %575 = arith.addf %571, %574 : vector<2x32xf32>
    %576 = math.tanh %575 : vector<2x32xf32>
    %cst_106 = arith.constant 1.000000e+00 : f32
    %577 = vector.broadcast %cst_106 : f32 to vector<2x32xf32>
    %578 = arith.subf %577, %569 : vector<2x32xf32>
    %579 = arith.mulf %578, %576 : vector<2x32xf32>
    %580 = arith.mulf %569, %556 : vector<2x32xf32>
    %581 = arith.addf %579, %580 : vector<2x32xf32>
    %582 = vector.shape_cast %281 : vector<2x1xi1> to vector<2x1xi1>
    %583 = vector.broadcast %582 : vector<2x1xi1> to vector<2x32xi1>
    %584 = arith.select %583, %581, %556 : vector<2x32xi1>, vector<2x32xf32>
    %585 = vector.extract_strided_slice %443 {offsets = [10, 0], sizes = [2, 128], strides = [1, 1]} : vector<14x128xf32> to vector<2x128xf32>
    %cst_107 = arith.constant dense<0.000000e+00> : vector<2x128xf32>
    %586 = tpu.matmul %584, %4, %cst_107 {dimension_numbers = #tpu.dot_dimension_numbers<[1], [0], [0], [1], [0, 0, 1, 1], [], []>} : vector<2x32xf32>, vector<32x128xf32>, vector<2x128xf32> -> vector<2x128xf32>
    %587 = vector.extract_strided_slice %585 {offsets = [0, 0], sizes = [2, 64], strides = [1, 1]} : vector<2x128xf32> to vector<2x64xf32>
    %588 = vector.extract_strided_slice %586 {offsets = [0, 0], sizes = [2, 64], strides = [1, 1]} : vector<2x128xf32> to vector<2x64xf32>
    %589 = arith.addf %587, %588 : vector<2x64xf32>
    %590 = arith.addf %589, %439 : vector<2x64xf32>
    %591 = arith.negf %590 : vector<2x64xf32>
    %592 = math.exp %591 : vector<2x64xf32>
    %cst_108 = arith.constant 1.000000e+00 : f32
    %593 = vector.broadcast %cst_108 : f32 to vector<2x64xf32>
    %594 = arith.addf %593, %592 : vector<2x64xf32>
    %595 = arith.divf %593, %594 : vector<2x64xf32>
    %596 = vector.extract_strided_slice %595 {offsets = [0, 0], sizes = [2, 32], strides = [1, 1]} : vector<2x64xf32> to vector<2x32xf32>
    %597 = vector.extract_strided_slice %595 {offsets = [0, 32], sizes = [2, 32], strides = [1, 1]} : vector<2x64xf32> to vector<2x32xf32>
    %598 = vector.extract_strided_slice %585 {offsets = [0, 64], sizes = [2, 32], strides = [1, 1]} : vector<2x128xf32> to vector<2x32xf32>
    %599 = arith.addf %598, %440 : vector<2x32xf32>
    %600 = vector.extract_strided_slice %586 {offsets = [0, 64], sizes = [2, 32], strides = [1, 1]} : vector<2x128xf32> to vector<2x32xf32>
    %601 = arith.addf %600, %441 : vector<2x32xf32>
    %602 = arith.mulf %596, %601 : vector<2x32xf32>
    %603 = arith.addf %599, %602 : vector<2x32xf32>
    %604 = math.tanh %603 : vector<2x32xf32>
    %cst_109 = arith.constant 1.000000e+00 : f32
    %605 = vector.broadcast %cst_109 : f32 to vector<2x32xf32>
    %606 = arith.subf %605, %597 : vector<2x32xf32>
    %607 = arith.mulf %606, %604 : vector<2x32xf32>
    %608 = arith.mulf %597, %584 : vector<2x32xf32>
    %609 = arith.addf %607, %608 : vector<2x32xf32>
    %610 = vector.shape_cast %330 : vector<2x1xi1> to vector<2x1xi1>
    %611 = vector.broadcast %610 : vector<2x1xi1> to vector<2x32xi1>
    %612 = arith.select %611, %609, %584 : vector<2x32xi1>, vector<2x32xf32>
    %613 = vector.extract_strided_slice %443 {offsets = [12, 0], sizes = [2, 128], strides = [1, 1]} : vector<14x128xf32> to vector<2x128xf32>
    %cst_110 = arith.constant dense<0.000000e+00> : vector<2x128xf32>
    %614 = tpu.matmul %612, %4, %cst_110 {dimension_numbers = #tpu.dot_dimension_numbers<[1], [0], [0], [1], [0, 0, 1, 1], [], []>} : vector<2x32xf32>, vector<32x128xf32>, vector<2x128xf32> -> vector<2x128xf32>
    %615 = vector.extract_strided_slice %613 {offsets = [0, 0], sizes = [2, 64], strides = [1, 1]} : vector<2x128xf32> to vector<2x64xf32>
    %616 = vector.extract_strided_slice %614 {offsets = [0, 0], sizes = [2, 64], strides = [1, 1]} : vector<2x128xf32> to vector<2x64xf32>
    %617 = arith.addf %615, %616 : vector<2x64xf32>
    %618 = arith.addf %617, %439 : vector<2x64xf32>
    %619 = arith.negf %618 : vector<2x64xf32>
    %620 = math.exp %619 : vector<2x64xf32>
    %cst_111 = arith.constant 1.000000e+00 : f32
    %621 = vector.broadcast %cst_111 : f32 to vector<2x64xf32>
    %622 = arith.addf %621, %620 : vector<2x64xf32>
    %623 = arith.divf %621, %622 : vector<2x64xf32>
    %624 = vector.extract_strided_slice %623 {offsets = [0, 0], sizes = [2, 32], strides = [1, 1]} : vector<2x64xf32> to vector<2x32xf32>
    %625 = vector.extract_strided_slice %623 {offsets = [0, 32], sizes = [2, 32], strides = [1, 1]} : vector<2x64xf32> to vector<2x32xf32>
    %626 = vector.extract_strided_slice %613 {offsets = [0, 64], sizes = [2, 32], strides = [1, 1]} : vector<2x128xf32> to vector<2x32xf32>
    %627 = arith.addf %626, %440 : vector<2x32xf32>
    %628 = vector.extract_strided_slice %614 {offsets = [0, 64], sizes = [2, 32], strides = [1, 1]} : vector<2x128xf32> to vector<2x32xf32>
    %629 = arith.addf %628, %441 : vector<2x32xf32>
    %630 = arith.mulf %624, %629 : vector<2x32xf32>
    %631 = arith.addf %627, %630 : vector<2x32xf32>
    %632 = math.tanh %631 : vector<2x32xf32>
    %cst_112 = arith.constant 1.000000e+00 : f32
    %633 = vector.broadcast %cst_112 : f32 to vector<2x32xf32>
    %634 = arith.subf %633, %625 : vector<2x32xf32>
    %635 = arith.mulf %634, %632 : vector<2x32xf32>
    %636 = arith.mulf %625, %612 : vector<2x32xf32>
    %637 = arith.addf %635, %636 : vector<2x32xf32>
    %638 = vector.shape_cast %379 : vector<2x1xi1> to vector<2x1xi1>
    %639 = vector.broadcast %638 : vector<2x1xi1> to vector<2x32xi1>
    %640 = arith.select %639, %637, %612 : vector<2x32xi1>, vector<2x32xf32>
    %cst_113 = arith.constant dense<0.000000e+00> : vector<2x128xf32>
    %641 = tpu.matmul %640, %5, %cst_113 {dimension_numbers = #tpu.dot_dimension_numbers<[1], [0], [0], [1], [0, 0, 1, 1], [], []>} : vector<2x32xf32>, vector<32x128xf32>, vector<2x128xf32> -> vector<2x128xf32>
    %642 = vector.extract_strided_slice %641 {offsets = [0, 0], sizes = [2, 32], strides = [1, 1]} : vector<2x128xf32> to vector<2x32xf32>
    %643 = vector.extract_strided_slice %6 {offsets = [4, 0], sizes = [1, 32], strides = [1, 1]} : vector<8x128xf32> to vector<1x32xf32>
    %644 = vector.broadcast %643 : vector<1x32xf32> to vector<2x32xf32>
    %645 = arith.addf %642, %644 : vector<2x32xf32>
    %646 = arith.mulf %645, %645 : vector<2x32xf32>
    %cst_114 = arith.constant dense<0.000000e+00> : vector<2xf32>
    %647 = vector.multi_reduction <add>, %646, %cst_114 [1] : vector<2x32xf32> to vector<2xf32>
    %648 = vector.shape_cast %647 : vector<2xf32> to vector<2x1xf32>
    %649 = math.sqrt %648 : vector<2x1xf32>
    %cst_115 = arith.constant 9.99999971E-10 : f32
    %650 = vector.broadcast %cst_115 : f32 to vector<2x1xf32>
    %651 = arith.addf %649, %650 : vector<2x1xf32>
    %652 = tpu.reciprocal %651 {approx = true} : vector<2x1xf32> -> vector<2x1xf32>
    %653 = vector.broadcast %652 : vector<2x1xf32> to vector<2x32xf32>
    %654 = arith.mulf %645, %653 : vector<2x32xf32>
    %c8 = arith.constant 8 : index
    %c0_116 = arith.constant 0 : index
    %655 = vector.load %arg6[%c8, %c0_116] : memref<10x32xf32, #tpu.memory_space<vmem>>, vector<2x32xf32>
    tpu.vector_store %arg6[%c8, %c0_116], %654 {strides = array<i32>} : memref<10x32xf32, #tpu.memory_space<vmem>>, vector<2x32xf32>,
    return
  }
}

</mosaic_0001>

<llo_original>
// kernel: single_agent_forward.1
$region0: #{single_agent_forward.1}
  #allocation0 [shape = 'u32[]', space=smem, size = 0x4, offset = 0x4, fixed_abs, tag = 'smem constant byte address 0x4 - core index']
  #allocation1 [shape = 'u32[72,128]{1,0:T(1,128)}', space=vmem, size = 0x9000, scoped, tag = 'internal scratch']
  %s0 = inlined_call_operand.vmem [shape: f32[10,16], index: 0, kind: input, shape index: {}]
  %s1 = inlined_call_operand.vmem [shape: f32[2,128], index: 1, kind: input, shape index: {}]
  %s2 = inlined_call_operand.vmem [shape: f32[144,128], index: 2, kind: input, shape index: {}]
  %s3 = inlined_call_operand.vmem [shape: f32[8,128], index: 3, kind: input, shape index: {}]
  %s4 = inlined_call_operand.vmem [shape: f32[2,128], index: 4, kind: output, shape index: {0}]
  %s5 = inlined_call_operand.vmem [shape: s32[2,1], index: 5, kind: output, shape index: {1}]
  %s6 = inlined_call_operand.vmem [shape: f32[10,32], index: 6, kind: output, shape index: {2}]
  %7 = xla_tuple %s4, %s5, %s6
  %s8 = sld [smem:[#allocation0]]
  $region42: #{single_agent_forward.1} parent=0
    _
  %s10 = ssub.s32 1, %s8
  %s11 = scalar_select 0, %s10, %s8
  // Predicated region
  $region2: #{single_agent_forward.1} parent=0 // pred_check
    _
  $region3: #{single_agent_forward.1} parent=0 // pred_check_branch
    %13 = sbr.rel (0) target = $region5
  $region4: #{single_agent_forward.1} parent=0 // pred_region
    _
  $region5: #{single_agent_forward.1} parent=0 // pred_fallthru
    _
  // Predicated region
  $region6: #{single_agent_forward.1} parent=0 // pred_check
    _
  $region7: #{single_agent_forward.1} parent=0 // pred_check_branch
    %15 = sbr.rel (0) target = $region9
  $region8: #{single_agent_forward.1} parent=0 // pred_region
    _
  $region9: #{single_agent_forward.1} parent=0 // pred_fallthru
    _
  // Predicated region
  $region10: #{single_agent_forward.1} parent=0 // pred_check
    _
  $region11: #{single_agent_forward.1} parent=0 // pred_check_branch
    %17 = sbr.rel (0) target = $region13
  $region12: #{single_agent_forward.1} parent=0 // pred_region
    _
  $region13: #{single_agent_forward.1} parent=0 // pred_fallthru
    _
  // Predicated region
  $region14: #{single_agent_forward.1} parent=0 // pred_check
    _
  $region15: #{single_agent_forward.1} parent=0 // pred_check_branch
    %19 = sbr.rel (0) target = $region17
  $region16: #{single_agent_forward.1} parent=0 // pred_region
    _
  $region17: #{single_agent_forward.1} parent=0 // pred_fallthru
    _
  %v20 = vld [vmem:[%s2] sm:$0xff]
  %v21 = vld [vmem:[%s2 + $0x8] sm:$0xff]
  %v22 = vld [vmem:[%s2 + $0x10] sm:$0xff]
  %v23 = vld [vmem:[%s2 + $0x18] sm:$0xff]
  %v24 = vld [vmem:[%s2 + $0x20] sm:$0xff]
  %v25 = vld [vmem:[%s2 + $0x28] sm:$0xff]
  %v26 = vld [vmem:[%s2 + $0x30] sm:$0xff]
  %v27 = vld [vmem:[%s2 + $0x38] sm:$0xff]
  %v28 = vld [vmem:[%s2 + $0x40] sm:$0xff]
  %v29 = vld [vmem:[%s2 + $0x48] sm:$0xff]
  %v30 = vld [vmem:[%s2 + $0x50] sm:$0xff]
  %v31 = vld [vmem:[%s2 + $0x58] sm:$0xff]
  %v32 = vld [vmem:[%s2 + $0x60] sm:$0xff]
  %v33 = vld [vmem:[%s2 + $0x68] sm:$0xff]
  %v34 = vld [vmem:[%s2 + $0x70] sm:$0xff]
  %v35 = vld [vmem:[%s2 + $0x78] sm:$0xff]
  %v36 = vld [vmem:[%s2 + $0x80] sm:$0xff]
  %v37 = vld [vmem:[%s2 + $0x88] sm:$0xff]
  %v38 = vld [vmem:[%s3] sm:$0xff]
  %v39 = vld [vmem:[%s0] sm:$0xff]
  %v40 = vld [vmem:[%s0 + $0x8] sm:$0x3]
  %vm41 = vcmask 130048
  %v43 = vsel %vm41, %v39, 0
  %v46 = vsel %vm41, %v40, 0
  %48 = vmatpush.msra.mxu0 0.0
  %49 = vmatpush.msra.mxu0 0.0
  %50 = vmatpush.msra.mxu0 0.0
  %51 = vmatpush.msra.mxu0 0.0
  %52 = vmatpush.msra.mxu0 0.0
  %53 = vmatpush.msra.mxu0 0.0
  %54 = vmatpush.msra.mxu0 0.0
  %55 = vmatpush.msra.mxu0 0.0
  %56 = vmatpush.msra.mxu0 0.0
  %57 = vmatpush.msra.mxu0 0.0
  %58 = vmatpush.msra.mxu0 0.0
  %59 = vmatpush.msra.mxu0 0.0
  %60 = vmatpush.msra.mxu0 0.0
  %61 = vmatpush.msra.mxu0 0.0
  %62 = vmatpush.msra.mxu0 %v21
  %63 = vmatpush.msra.mxu0 %v20
  %64 = vmatmul.f32.gmra.mxu0 %v43
  %v65 = vpop.f32.mrf.mxu0
  %v66 = vadd.f32 0.0, %v65
  %67 = vmatmul.f32.gmra.mxu0 %v46
  %v68 = vpop.f32.mrf.mxu0
  %v69 = vadd.f32 0.0, %v68
  %70 = vdwg.mxu0
  %v71 = vperm.slane %v38, 0
  %v72 = vadd.f32 %v66, %v71
  %v73 = vadd.f32 %v69, %v71
  %v74 = vmul.f32 %v72, %v72
  %v75 = vmul.f32 %v73, %v73
  %vm76 = vcmask 261120
  %v77 = vsel %vm76, %v74, 0.0
  %78 = vadd.xlane.f32.xlu0 %v77
  %v79 = vpop.xlane.xlu0 %78
  %vm80 = vcmask 254976
  %v81 = vsel %vm80, %v75, 0.0
  %82 = vadd.xlane.f32.xlu0 %v81
  %v83 = vpop.xlane.xlu0 %82
  %v84 = vrsqrt.pop %v79
  %v85 = vmul.f32 %v84, %v79
  %v86 = vmul.f32 %v85, %v84
  %v87 = vmul.f32 0.5, %v86
  %v88 = vsub.f32 1.5, %v87
  %v89 = vmul.f32 %v84, %v88
  %v90 = vmul.f32 %v79, %v89
  %vm91 = vcmp.eq.f32.partialorder %v79, inf
  %v92 = vsel %vm91, %v79, %v90
  %vm93 = vcmp.eq.f32.partialorder %v79, 0.0
  %v94 = vand.u32 %v79, 2147483648
  %v95 = vsel %vm93, %v94, %v92
  %v96 = vrsqrt.pop %v83
  %v97 = vmul.f32 %v96, %v83
  %v98 = vmul.f32 %v97, %v96
  %v99 = vmul.f32 0.5, %v98
  %v100 = vsub.f32 1.5, %v99
  %v101 = vmul.f32 %v96, %v100
  %v102 = vmul.f32 %v83, %v101
  %vm103 = vcmp.eq.f32.partialorder %v83, inf
  %v104 = vsel %vm103, %v83, %v102
  %vm105 = vcmp.eq.f32.partialorder %v83, 0.0
  %v106 = vand.u32 %v83, 2147483648
  %v107 = vsel %vm105, %v106, %v104
  %v108 = vadd.f32 %v95, 1e-09
  %v109 = vadd.f32 %v107, 1e-09
  %v110 = vrcp.pop %v108
  %v111 = vrcp.pop %v109
  %v112 = vmul.f32 %v72, %v110
  %v113 = vmul.f32 %v73, %v111
  %vm114 = vcmask 261122
  %115 = vst.msk [vmem:[%s6 - $0x2] sm:$0xfc] %vm114, %v112
  %116 = vst.msk [vmem:[%s6 + $0x6] sm:$0x3] %vm80, %v113
  %v117 = vld [vmem:[%s1] sm:$0x3]
  %v118 = vperm.slane %v38, 2
  %v119 = vlaneseq
  %v120 = vand.u32 %v119, 127
  %vm121 = vcmp.eq.s32.totalorder %v120, 0
  %v122 = vsel %vm121, 1, 0
  %v123 = vcvt.s32.f32 %v122
  %v125 = vsel %vm76, %v112, 0
  %127 = vmatpush.msra.mxu0 0.0
  %128 = vmatpush.msra.mxu0 0.0
  %129 = vmatpush.msra.mxu0 0.0
  %130 = vmatpush.msra.mxu0 0.0
  %131 = vmatpush.msra.mxu0 0.0
  %132 = vmatpush.msra.mxu0 0.0
  %133 = vmatpush.msra.mxu0 0.0
  %134 = vmatpush.msra.mxu0 0.0
  %135 = vmatpush.msra.mxu0 0.0
  %136 = vmatpush.msra.mxu0 0.0
  %137 = vmatpush.msra.mxu0 0.0
  %138 = vmatpush.msra.mxu0 0.0
  %139 = vmatpush.msra.mxu0 %v25
  %140 = vmatpush.msra.mxu0 %v24
  %141 = vmatpush.msra.mxu0 %v23
  %142 = vmatpush.msra.mxu0 %v22
  %143 = vmatmul.f32.gmra.mxu0 %v125
  %v144 = vpop.f32.mrf.mxu0
  %v145 = vadd.f32 0.0, %v144
  %146 = vdwg.mxu0
  %v147 = vperm.slane %v38, 1
  %v148 = vadd.f32 %v147, %v145
  %v149 = vadd.f32 %v148, %v118
  %v150 = vxor.u32 %v149, 2147483648
  %v151 = vmul.f32 %v150, 1.442695
  %v152 = vpow.pop %v151
  %v153 = vadd.f32 %v152, 1.0
  %v154 = vrcp.pop %v153
  %v155 = vmul.f32 %v153, %v154
  %v156 = vsub.f32 1.0, %v155
  %v157 = vmul.f32 %v154, %v156
  %v158 = vadd.f32 %v154, %v157
  %vm159 = vweird.f32 %v153
  %vm160 = vweird.f32 %v154
  %vm161 = vmor %vm159, %vm160
  %v162 = vsel %vm161, %v154, %v158
  %v163 = vand.u32 2147483647, %v153
  %vm164 = vcmp.eq.f32.partialorder %v163, 8.507059e+37
  %v165 = vand.u32 %v153, 2147483648
  %v166 = vor.u32 1.1754944e-38, %v165
  %v167 = vsel %vm164, %v166, %v162
  %v168 = vmul.f32 1.0, %v167
  %v169 = vadd.f32 %v147, %v118
  %171 = vrot.lane.b32.xlu0 %v118, 96
  %v172 = vpop.permute.xlu0 %171
  %v174 = vadd.f32 %v145, %v172
  %176 = vrot.lane.b32.xlu0 %v174, 64
  %v177 = vpop.permute.xlu0 %176
  %v179 = vmul.f32 %v168, %v177
  %181 = vrot.lane.b32.xlu0 %v179, 64
  %v182 = vpop.permute.xlu0 %181
  %v184 = vadd.f32 %v169, %v182
  %v185 = vtanh.pop %v184
  %v186 = vsub.f32 1.0, %v168
  %188 = vrot.lane.b32.xlu0 %v185, 96
  %v189 = vpop.permute.xlu0 %188
  %v191 = vmul.f32 %v186, %v189
  %192 = vrot.lane.b32.xlu0 %v112, 32
  %v193 = vpop.permute.xlu0 %192
  %v195 = vmul.f32 %v168, %v193
  %v196 = vadd.f32 %v191, %v195
  %198 = vrot.lane.b32.xlu0 %v196, 96
  %v199 = vpop.permute.xlu0 %198
  %v200 = vsel %vm76, %v199, 0
  %202 = vmatpush.msra.mxu0 0.0
  %203 = vmatpush.msra.mxu0 0.0
  %204 = vmatpush.msra.mxu0 0.0
  %205 = vmatpush.msra.mxu0 0.0
  %206 = vmatpush.msra.mxu0 0.0
  %207 = vmatpush.msra.mxu0 0.0
  %208 = vmatpush.msra.mxu0 0.0
  %209 = vmatpush.msra.mxu0 0.0
  %210 = vmatpush.msra.mxu0 0.0
  %211 = vmatpush.msra.mxu0 0.0
  %212 = vmatpush.msra.mxu0 0.0
  %213 = vmatpush.msra.mxu0 0.0
  %214 = vmatpush.msra.mxu0 %v25
  %215 = vmatpush.msra.mxu0 %v24
  %216 = vmatpush.msra.mxu0 %v23
  %217 = vmatpush.msra.mxu0 %v22
  %218 = vmatmul.f32.gmra.mxu0 %v200
  %v219 = vpop.f32.mrf.mxu0
  %v220 = vadd.f32 0.0, %v219
  %221 = vdwg.mxu0
  %223 = vrot.lane.b32.xlu0 %v117, 96
  %v224 = vpop.permute.xlu0 %223
  %v226 = vadd.f32 %v220, %v224
  %vm227 = vcmask 911104
  %v228 = vsel %vm227, %v226, -inf
  %229 = vmax.xlane.f32.xlu0 %v228
  %v230 = vpop.xlane.xlu0 %229
  %vm231 = vcmp.ge.f32.partialorder %v226, %v230
  %232 = vrot.lane.b32.xlu0 %v120, 96
  %v233 = vpop.permute.xlu0 %232
  %v234 = vsel %vm231, %v233, 16
  %v235 = vsel %vm227, %v234, 2147483647
  %v236 = vand.u32 %v235, 65535
  %v237 = vshra.s32 %v235, 16
  %v238 = vcvt.s32.f32 %v236
  %v239 = vcvt.s32.f32 %v237
  %240 = vmin.xlane.f32.xlu0 %v239
  %v241 = vpop.xlane.xlu0 %240
  %vm242 = vcmp.eq.f32.partialorder %v239, %v241
  %v243 = vsel %vm242, %v238, inf
  %244 = vmin.xlane.f32.xlu0 %v243
  %v245 = vpop.xlane.xlu0 %244
  %v246 = vcvt.f32.s32 %v245
  %v247 = vcvt.f32.s32 %v241
  %v248 = vshll.u32 %v247, 16
  %v249 = vadd.s32 %v248, %v246
  %vm250 = vcmp.eq.s32.totalorder %v120, %v249
  %v251 = vsel %vm250, 1, 0
  %v252 = vcvt.s32.f32 %v251
  %vm253 = vcmp.eq.s32.totalorder %v249, 3
  %vm254 = vmxor %vm253, 1
  %v255 = vsel %vm254, 1, 0
  %vm256 = vcmp.eq.s32.totalorder %v255, 1
  %v257 = vsel %vm256, %v252, %v123
  %v259 = vsel %vm41, %v252, 0
  %261 = vmatpush.msra.mxu0 0.0
  %262 = vmatpush.msra.mxu0 0.0
  %263 = vmatpush.msra.mxu0 0.0
  %264 = vmatpush.msra.mxu0 0.0
  %265 = vmatpush.msra.mxu0 0.0
  %266 = vmatpush.msra.mxu0 0.0
  %267 = vmatpush.msra.mxu0 0.0
  %268 = vmatpush.msra.mxu0 0.0
  %269 = vmatpush.msra.mxu0 0.0
  %270 = vmatpush.msra.mxu0 0.0
  %271 = vmatpush.msra.mxu0 0.0
  %272 = vmatpush.msra.mxu0 0.0
  %273 = vmatpush.msra.mxu0 0.0
  %274 = vmatpush.msra.mxu0 0.0
  %275 = vmatpush.msra.mxu0 %v27
  %276 = vmatpush.msra.mxu0 %v26
  %277 = vmatmul.f32.gmra.mxu0 %v259
  %v278 = vpop.f32.mrf.mxu0
  %v279 = vadd.f32 0.0, %v278
  %280 = vdwg.mxu0
  %v281 = vadd.f32 %v279, %v220
  %v282 = vadd.f32 %v281, %v118
  %v283 = vxor.u32 %v282, 2147483648
  %v284 = vmul.f32 %v283, 1.442695
  %v285 = vpow.pop %v284
  %v286 = vadd.f32 %v285, 1.0
  %v287 = vrcp.pop %v286
  %v288 = vmul.f32 %v286, %v287
  %v289 = vsub.f32 1.0, %v288
  %v290 = vmul.f32 %v287, %v289
  %v291 = vadd.f32 %v287, %v290
  %vm292 = vweird.f32 %v286
  %vm293 = vweird.f32 %v287
  %vm294 = vmor %vm292, %vm293
  %v295 = vsel %vm294, %v287, %v291
  %v296 = vand.u32 2147483647, %v286
  %vm297 = vcmp.eq.f32.partialorder %v296, 8.507059e+37
  %v298 = vand.u32 %v286, 2147483648
  %v299 = vor.u32 1.1754944e-38, %v298
  %v300 = vsel %vm297, %v299, %v295
  %v301 = vmul.f32 1.0, %v300
  %v302 = vadd.f32 %v279, %v118
  %v303 = vadd.f32 %v220, %v172
  %305 = vrot.lane.b32.xlu0 %v303, 64
  %v306 = vpop.permute.xlu0 %305
  %v308 = vmul.f32 %v301, %v306
  %310 = vrot.lane.b32.xlu0 %v308, 64
  %v311 = vpop.permute.xlu0 %310
  %v313 = vadd.f32 %v302, %v311
  %v314 = vtanh.pop %v313
  %v315 = vsub.f32 1.0, %v301
  %317 = vrot.lane.b32.xlu0 %v314, 96
  %v318 = vpop.permute.xlu0 %317
  %v320 = vmul.f32 %v315, %v318
  %v321 = vmul.f32 %v301, %v196
  %v322 = vadd.f32 %v320, %v321
  %324 = vrot.lane.b32.xlu0 %v322, 96
  %v325 = vpop.permute.xlu0 %324
  %v326 = vsel %vm76, %v325, 0
  %328 = vmatpush.msra.mxu0 0.0
  %329 = vmatpush.msra.mxu0 0.0
  %330 = vmatpush.msra.mxu0 0.0
  %331 = vmatpush.msra.mxu0 0.0
  %332 = vmatpush.msra.mxu0 0.0
  %333 = vmatpush.msra.mxu0 0.0
  %334 = vmatpush.msra.mxu0 0.0
  %335 = vmatpush.msra.mxu0 0.0
  %336 = vmatpush.msra.mxu0 0.0
  %337 = vmatpush.msra.mxu0 0.0
  %338 = vmatpush.msra.mxu0 0.0
  %339 = vmatpush.msra.mxu0 0.0
  %340 = vmatpush.msra.mxu0 %v25
  %341 = vmatpush.msra.mxu0 %v24
  %342 = vmatpush.msra.mxu0 %v23
  %343 = vmatpush.msra.mxu0 %v22
  %344 = vmatmul.f32.gmra.mxu0 %v326
  %v345 = vpop.f32.mrf.mxu0
  %v346 = vadd.f32 0.0, %v345
  %347 = vdwg.mxu0
  %348 = vrot.lane.b32.xlu0 %v117, 80
  %v349 = vpop.permute.xlu0 %348
  %v351 = vadd.f32 %v346, %v349
  %v352 = vsel %vm227, %v351, -inf
  %353 = vmax.xlane.f32.xlu0 %v352
  %v354 = vpop.xlane.xlu0 %353
  %vm355 = vcmp.ge.f32.partialorder %v351, %v354
  %v356 = vsel %vm355, %v233, 16
  %v357 = vsel %vm227, %v356, 2147483647
  %v358 = vand.u32 %v357, 65535
  %v359 = vshra.s32 %v357, 16
  %v360 = vcvt.s32.f32 %v358
  %v361 = vcvt.s32.f32 %v359
  %362 = vmin.xlane.f32.xlu0 %v361
  %v363 = vpop.xlane.xlu0 %362
  %vm364 = vcmp.eq.f32.partialorder %v361, %v363
  %v365 = vsel %vm364, %v360, inf
  %366 = vmin.xlane.f32.xlu0 %v365
  %v367 = vpop.xlane.xlu0 %366
  %v368 = vcvt.f32.s32 %v367
  %v369 = vcvt.f32.s32 %v363
  %v370 = vshll.u32 %v369, 16
  %v371 = vadd.s32 %v370, %v368
  %vm372 = vcmp.eq.s32.totalorder %v120, %v371
  %v373 = vsel %vm372, 1, 0
  %v374 = vcvt.s32.f32 %v373
  %vm375 = vcmp.eq.s32.totalorder %v371, 3
  %vm376 = vmor %vm253, %vm375
  %vm377 = vmxor %vm376, 1
  %v378 = vsel %vm377, 1, 0
  %vm379 = vcmp.eq.s32.totalorder %v378, 1
  %v380 = vsel %vm379, %v374, %v123
  %v381 = vadd.s32 %v255, %v378
  %v383 = vsel %vm41, %v374, 0
  %385 = vmatpush.msra.mxu0 0.0
  %386 = vmatpush.msra.mxu0 0.0
  %387 = vmatpush.msra.mxu0 0.0
  %388 = vmatpush.msra.mxu0 0.0
  %389 = vmatpush.msra.mxu0 0.0
  %390 = vmatpush.msra.mxu0 0.0
  %391 = vmatpush.msra.mxu0 0.0
  %392 = vmatpush.msra.mxu0 0.0
  %393 = vmatpush.msra.mxu0 0.0
  %394 = vmatpush.msra.mxu0 0.0
  %395 = vmatpush.msra.mxu0 0.0
  %396 = vmatpush.msra.mxu0 0.0
  %397 = vmatpush.msra.mxu0 0.0
  %398 = vmatpush.msra.mxu0 0.0
  %399 = vmatpush.msra.mxu0 %v27
  %400 = vmatpush.msra.mxu0 %v26
  %401 = vmatmul.f32.gmra.mxu0 %v383
  %v402 = vpop.f32.mrf.mxu0
  %v403 = vadd.f32 0.0, %v402
  %404 = vdwg.mxu0
  %v405 = vadd.f32 %v403, %v346
  %v406 = vadd.f32 %v405, %v118
  %v407 = vxor.u32 %v406, 2147483648
  %v408 = vmul.f32 %v407, 1.442695
  %v409 = vpow.pop %v408
  %v410 = vadd.f32 %v409, 1.0
  %v411 = vrcp.pop %v410
  %v412 = vmul.f32 %v410, %v411
  %v413 = vsub.f32 1.0, %v412
  %v414 = vmul.f32 %v411, %v413
  %v415 = vadd.f32 %v411, %v414
  %vm416 = vweird.f32 %v410
  %vm417 = vweird.f32 %v411
  %vm418 = vmor %vm416, %vm417
  %v419 = vsel %vm418, %v411, %v415
  %v420 = vand.u32 2147483647, %v410
  %vm421 = vcmp.eq.f32.partialorder %v420, 8.507059e+37
  %v422 = vand.u32 %v410, 2147483648
  %v423 = vor.u32 1.1754944e-38, %v422
  %v424 = vsel %vm421, %v423, %v419
  %v425 = vmul.f32 1.0, %v424
  %v426 = vadd.f32 %v403, %v118
  %v427 = vadd.f32 %v346, %v172
  %429 = vrot.lane.b32.xlu0 %v427, 64
  %v430 = vpop.permute.xlu0 %429
  %v432 = vmul.f32 %v425, %v430
  %434 = vrot.lane.b32.xlu0 %v432, 64
  %v435 = vpop.permute.xlu0 %434
  %v437 = vadd.f32 %v426, %v435
  %v438 = vtanh.pop %v437
  %v439 = vsub.f32 1.0, %v425
  %441 = vrot.lane.b32.xlu0 %v438, 96
  %v442 = vpop.permute.xlu0 %441
  %v444 = vmul.f32 %v439, %v442
  %v445 = vmul.f32 %v425, %v322
  %v446 = vadd.f32 %v444, %v445
  %448 = vrot.lane.b32.xlu0 %v446, 96
  %v449 = vpop.permute.xlu0 %448
  %v450 = vsel %vm76, %v449, 0
  %452 = vmatpush.msra.mxu0 0.0
  %453 = vmatpush.msra.mxu0 0.0
  %454 = vmatpush.msra.mxu0 0.0
  %455 = vmatpush.msra.mxu0 0.0
  %456 = vmatpush.msra.mxu0 0.0
  %457 = vmatpush.msra.mxu0 0.0
  %458 = vmatpush.msra.mxu0 0.0
  %459 = vmatpush.msra.mxu0 0.0
  %460 = vmatpush.msra.mxu0 0.0
  %461 = vmatpush.msra.mxu0 0.0
  %462 = vmatpush.msra.mxu0 0.0
  %463 = vmatpush.msra.mxu0 0.0
  %464 = vmatpush.msra.mxu0 %v25
  %465 = vmatpush.msra.mxu0 %v24
  %466 = vmatpush.msra.mxu0 %v23
  %467 = vmatpush.msra.mxu0 %v22
  %468 = vmatmul.f32.gmra.mxu0 %v450
  %v469 = vpop.f32.mrf.mxu0
  %v470 = vadd.f32 0.0, %v469
  %471 = vdwg.mxu0
  %472 = vrot.lane.b32.xlu0 %v117, 64
  %v473 = vpop.permute.xlu0 %472
  %v475 = vadd.f32 %v470, %v473
  %v476 = vsel %vm227, %v475, -inf
  %477 = vmax.xlane.f32.xlu0 %v476
  %v478 = vpop.xlane.xlu0 %477
  %vm479 = vcmp.ge.f32.partialorder %v475, %v478
  %v480 = vsel %vm479, %v233, 16
  %v481 = vsel %vm227, %v480, 2147483647
  %v482 = vand.u32 %v481, 65535
  %v483 = vshra.s32 %v481, 16
  %v484 = vcvt.s32.f32 %v482
  %v485 = vcvt.s32.f32 %v483
  %486 = vmin.xlane.f32.xlu0 %v485
  %v487 = vpop.xlane.xlu0 %486
  %vm488 = vcmp.eq.f32.partialorder %v485, %v487
  %v489 = vsel %vm488, %v484, inf
  %490 = vmin.xlane.f32.xlu0 %v489
  %v491 = vpop.xlane.xlu0 %490
  %v492 = vcvt.f32.s32 %v491
  %v493 = vcvt.f32.s32 %v487
  %v494 = vshll.u32 %v493, 16
  %v495 = vadd.s32 %v494, %v492
  %vm496 = vcmp.eq.s32.totalorder %v120, %v495
  %v497 = vsel %vm496, 1, 0
  %v498 = vcvt.s32.f32 %v497
  %vm499 = vcmp.eq.s32.totalorder %v495, 3
  %vm500 = vmor %vm376, %vm499
  %vm501 = vmxor %vm500, 1
  %v502 = vsel %vm501, 1, 0
  %vm503 = vcmp.eq.s32.totalorder %v502, 1
  %v504 = vsel %vm503, %v498, %v123
  %v505 = vadd.s32 %v381, %v502
  %v507 = vsel %vm41, %v498, 0
  %509 = vmatpush.msra.mxu0 0.0
  %510 = vmatpush.msra.mxu0 0.0
  %511 = vmatpush.msra.mxu0 0.0
  %512 = vmatpush.msra.mxu0 0.0
  %513 = vmatpush.msra.mxu0 0.0
  %514 = vmatpush.msra.mxu0 0.0
  %515 = vmatpush.msra.mxu0 0.0
  %516 = vmatpush.msra.mxu0 0.0
  %517 = vmatpush.msra.mxu0 0.0
  %518 = vmatpush.msra.mxu0 0.0
  %519 = vmatpush.msra.mxu0 0.0
  %520 = vmatpush.msra.mxu0 0.0
  %521 = vmatpush.msra.mxu0 0.0
  %522 = vmatpush.msra.mxu0 0.0
  %523 = vmatpush.msra.mxu0 %v27
  %524 = vmatpush.msra.mxu0 %v26
  %525 = vmatmul.f32.gmra.mxu0 %v507
  %v526 = vpop.f32.mrf.mxu0
  %v527 = vadd.f32 0.0, %v526
  %528 = vdwg.mxu0
  %v529 = vadd.f32 %v527, %v470
  %v530 = vadd.f32 %v529, %v118
  %v531 = vxor.u32 %v530, 2147483648
  %v532 = vmul.f32 %v531, 1.442695
  %v533 = vpow.pop %v532
  %v534 = vadd.f32 %v533, 1.0
  %v535 = vrcp.pop %v534
  %v536 = vmul.f32 %v534, %v535
  %v537 = vsub.f32 1.0, %v536
  %v538 = vmul.f32 %v535, %v537
  %v539 = vadd.f32 %v535, %v538
  %vm540 = vweird.f32 %v534
  %vm541 = vweird.f32 %v535
  %vm542 = vmor %vm540, %vm541
  %v543 = vsel %vm542, %v535, %v539
  %v544 = vand.u32 2147483647, %v534
  %vm545 = vcmp.eq.f32.partialorder %v544, 8.507059e+37
  %v546 = vand.u32 %v534, 2147483648
  %v547 = vor.u32 1.1754944e-38, %v546
  %v548 = vsel %vm545, %v547, %v543
  %v549 = vmul.f32 1.0, %v548
  %v550 = vadd.f32 %v527, %v118
  %v551 = vadd.f32 %v470, %v172
  %553 = vrot.lane.b32.xlu0 %v551, 64
  %v554 = vpop.permute.xlu0 %553
  %v556 = vmul.f32 %v549, %v554
  %558 = vrot.lane.b32.xlu0 %v556, 64
  %v559 = vpop.permute.xlu0 %558
  %v561 = vadd.f32 %v550, %v559
  %v562 = vtanh.pop %v561
  %v563 = vsub.f32 1.0, %v549
  %565 = vrot.lane.b32.xlu0 %v562, 96
  %v566 = vpop.permute.xlu0 %565
  %v568 = vmul.f32 %v563, %v566
  %v569 = vmul.f32 %v549, %v446
  %v570 = vadd.f32 %v568, %v569
  %572 = vrot.lane.b32.xlu0 %v570, 96
  %v573 = vpop.permute.xlu0 %572
  %v574 = vsel %vm76, %v573, 0
  %576 = vmatpush.msra.mxu0 0.0
  %577 = vmatpush.msra.mxu0 0.0
  %578 = vmatpush.msra.mxu0 0.0
  %579 = vmatpush.msra.mxu0 0.0
  %580 = vmatpush.msra.mxu0 0.0
  %581 = vmatpush.msra.mxu0 0.0
  %582 = vmatpush.msra.mxu0 0.0
  %583 = vmatpush.msra.mxu0 0.0
  %584 = vmatpush.msra.mxu0 0.0
  %585 = vmatpush.msra.mxu0 0.0
  %586 = vmatpush.msra.mxu0 0.0
  %587 = vmatpush.msra.mxu0 0.0
  %588 = vmatpush.msra.mxu0 %v25
  %589 = vmatpush.msra.mxu0 %v24
  %590 = vmatpush.msra.mxu0 %v23
  %591 = vmatpush.msra.mxu0 %v22
  %592 = vmatmul.f32.gmra.mxu0 %v574
  %v593 = vpop.f32.mrf.mxu0
  %v594 = vadd.f32 0.0, %v593
  %595 = vdwg.mxu0
  %596 = vrot.lane.b32.xlu0 %v117, 48
  %v597 = vpop.permute.xlu0 %596
  %v599 = vadd.f32 %v594, %v597
  %v600 = vsel %vm227, %v599, -inf
  %601 = vmax.xlane.f32.xlu0 %v600
  %v602 = vpop.xlane.xlu0 %601
  %vm603 = vcmp.ge.f32.partialorder %v599, %v602
  %v604 = vsel %vm603, %v233, 16
  %v605 = vsel %vm227, %v604, 2147483647
  %v606 = vand.u32 %v605, 65535
  %v607 = vshra.s32 %v605, 16
  %v608 = vcvt.s32.f32 %v606
  %v609 = vcvt.s32.f32 %v607
  %610 = vmin.xlane.f32.xlu0 %v609
  %v611 = vpop.xlane.xlu0 %610
  %vm612 = vcmp.eq.f32.partialorder %v609, %v611
  %v613 = vsel %vm612, %v608, inf
  %614 = vmin.xlane.f32.xlu0 %v613
  %v615 = vpop.xlane.xlu0 %614
  %v616 = vcvt.f32.s32 %v615
  %v617 = vcvt.f32.s32 %v611
  %v618 = vshll.u32 %v617, 16
  %v619 = vadd.s32 %v618, %v616
  %vm620 = vcmp.eq.s32.totalorder %v120, %v619
  %v621 = vsel %vm620, 1, 0
  %v622 = vcvt.s32.f32 %v621
  %vm623 = vcmp.eq.s32.totalorder %v619, 3
  %vm624 = vmor %vm500, %vm623
  %vm625 = vmxor %vm624, 1
  %v626 = vsel %vm625, 1, 0
  %vm627 = vcmp.eq.s32.totalorder %v626, 1
  %v628 = vsel %vm627, %v622, %v123
  %v629 = vadd.s32 %v505, %v626
  %v631 = vsel %vm41, %v622, 0
  %633 = vmatpush.msra.mxu0 0.0
  %634 = vmatpush.msra.mxu0 0.0
  %635 = vmatpush.msra.mxu0 0.0
  %636 = vmatpush.msra.mxu0 0.0
  %637 = vmatpush.msra.mxu0 0.0
  %638 = vmatpush.msra.mxu0 0.0
  %639 = vmatpush.msra.mxu0 0.0
  %640 = vmatpush.msra.mxu0 0.0
  %641 = vmatpush.msra.mxu0 0.0
  %642 = vmatpush.msra.mxu0 0.0
  %643 = vmatpush.msra.mxu0 0.0
  %644 = vmatpush.msra.mxu0 0.0
  %645 = vmatpush.msra.mxu0 0.0
  %646 = vmatpush.msra.mxu0 0.0
  %647 = vmatpush.msra.mxu0 %v27
  %648 = vmatpush.msra.mxu0 %v26
  %649 = vmatmul.f32.gmra.mxu0 %v631
  %v650 = vpop.f32.mrf.mxu0
  %v651 = vadd.f32 0.0, %v650
  %652 = vdwg.mxu0
  %v653 = vadd.f32 %v651, %v594
  %v654 = vadd.f32 %v653, %v118
  %v655 = vxor.u32 %v654, 2147483648
  %v656 = vmul.f32 %v655, 1.442695
  %v657 = vpow.pop %v656
  %v658 = vadd.f32 %v657, 1.0
  %v659 = vrcp.pop %v658
  %v660 = vmul.f32 %v658, %v659
  %v661 = vsub.f32 1.0, %v660
  %v662 = vmul.f32 %v659, %v661
  %v663 = vadd.f32 %v659, %v662
  %vm664 = vweird.f32 %v658
  %vm665 = vweird.f32 %v659
  %vm666 = vmor %vm664, %vm665
  %v667 = vsel %vm666, %v659, %v663
  %v668 = vand.u32 2147483647, %v658
  %vm669 = vcmp.eq.f32.partialorder %v668, 8.507059e+37
  %v670 = vand.u32 %v658, 2147483648
  %v671 = vor.u32 1.1754944e-38, %v670
  %v672 = vsel %vm669, %v671, %v667
  %v673 = vmul.f32 1.0, %v672
  %v674 = vadd.f32 %v651, %v118
  %v675 = vadd.f32 %v594, %v172
  %677 = vrot.lane.b32.xlu0 %v675, 64
  %v678 = vpop.permute.xlu0 %677
  %v680 = vmul.f32 %v673, %v678
  %682 = vrot.lane.b32.xlu0 %v680, 64
  %v683 = vpop.permute.xlu0 %682
  %v685 = vadd.f32 %v674, %v683
  %v686 = vtanh.pop %v685
  %v687 = vsub.f32 1.0, %v673
  %689 = vrot.lane.b32.xlu0 %v686, 96
  %v690 = vpop.permute.xlu0 %689
  %v692 = vmul.f32 %v687, %v690
  %v693 = vmul.f32 %v673, %v570
  %v694 = vadd.f32 %v692, %v693
  %696 = vrot.lane.b32.xlu0 %v694, 96
  %v697 = vpop.permute.xlu0 %696
  %v698 = vsel %vm76, %v697, 0
  %700 = vmatpush.msra.mxu0 0.0
  %701 = vmatpush.msra.mxu0 0.0
  %702 = vmatpush.msra.mxu0 0.0
  %703 = vmatpush.msra.mxu0 0.0
  %704 = vmatpush.msra.mxu0 0.0
  %705 = vmatpush.msra.mxu0 0.0
  %706 = vmatpush.msra.mxu0 0.0
  %707 = vmatpush.msra.mxu0 0.0
  %708 = vmatpush.msra.mxu0 0.0
  %709 = vmatpush.msra.mxu0 0.0
  %710 = vmatpush.msra.mxu0 0.0
  %711 = vmatpush.msra.mxu0 0.0
  %712 = vmatpush.msra.mxu0 %v25
  %713 = vmatpush.msra.mxu0 %v24
  %714 = vmatpush.msra.mxu0 %v23
  %715 = vmatpush.msra.mxu0 %v22
  %716 = vmatmul.f32.gmra.mxu0 %v698
  %v717 = vpop.f32.mrf.mxu0
  %v718 = vadd.f32 0.0, %v717
  %719 = vdwg.mxu0
  %720 = vrot.lane.b32.xlu0 %v117, 32
  %v721 = vpop.permute.xlu0 %720
  %v723 = vadd.f32 %v718, %v721
  %v724 = vsel %vm227, %v723, -inf
  %725 = vmax.xlane.f32.xlu0 %v724
  %v726 = vpop.xlane.xlu0 %725
  %vm727 = vcmp.ge.f32.partialorder %v723, %v726
  %v728 = vsel %vm727, %v233, 16
  %v729 = vsel %vm227, %v728, 2147483647
  %v730 = vand.u32 %v729, 65535
  %v731 = vshra.s32 %v729, 16
  %v732 = vcvt.s32.f32 %v730
  %v733 = vcvt.s32.f32 %v731
  %734 = vmin.xlane.f32.xlu0 %v733
  %v735 = vpop.xlane.xlu0 %734
  %vm736 = vcmp.eq.f32.partialorder %v733, %v735
  %v737 = vsel %vm736, %v732, inf
  %738 = vmin.xlane.f32.xlu0 %v737
  %v739 = vpop.xlane.xlu0 %738
  %v740 = vcvt.f32.s32 %v739
  %v741 = vcvt.f32.s32 %v735
  %v742 = vshll.u32 %v741, 16
  %v743 = vadd.s32 %v742, %v740
  %vm744 = vcmp.eq.s32.totalorder %v120, %v743
  %v745 = vsel %vm744, 1, 0
  %v746 = vcvt.s32.f32 %v745
  %vm747 = vcmp.eq.s32.totalorder %v743, 3
  %vm748 = vmor %vm624, %vm747
  %vm749 = vmxor %vm748, 1
  %v750 = vsel %vm749, 1, 0
  %vm751 = vcmp.eq.s32.totalorder %v750, 1
  %v752 = vsel %vm751, %v746, %v123
  %v753 = vadd.s32 %v629, %v750
  %v755 = vsel %vm41, %v746, 0
  %757 = vmatpush.msra.mxu0 0.0
  %758 = vmatpush.msra.mxu0 0.0
  %759 = vmatpush.msra.mxu0 0.0
  %760 = vmatpush.msra.mxu0 0.0
  %761 = vmatpush.msra.mxu0 0.0
  %762 = vmatpush.msra.mxu0 0.0
  %763 = vmatpush.msra.mxu0 0.0
  %764 = vmatpush.msra.mxu0 0.0
  %765 = vmatpush.msra.mxu0 0.0
  %766 = vmatpush.msra.mxu0 0.0
  %767 = vmatpush.msra.mxu0 0.0
  %768 = vmatpush.msra.mxu0 0.0
  %769 = vmatpush.msra.mxu0 0.0
  %770 = vmatpush.msra.mxu0 0.0
  %771 = vmatpush.msra.mxu0 %v27
  %772 = vmatpush.msra.mxu0 %v26
  %773 = vmatmul.f32.gmra.mxu0 %v755
  %v774 = vpop.f32.mrf.mxu0
  %v775 = vadd.f32 0.0, %v774
  %776 = vdwg.mxu0
  %v777 = vadd.f32 %v775, %v718
  %v778 = vadd.f32 %v777, %v118
  %v779 = vxor.u32 %v778, 2147483648
  %v780 = vmul.f32 %v779, 1.442695
  %v781 = vpow.pop %v780
  %v782 = vadd.f32 %v781, 1.0
  %v783 = vrcp.pop %v782
  %v784 = vmul.f32 %v782, %v783
  %v785 = vsub.f32 1.0, %v784
  %v786 = vmul.f32 %v783, %v785
  %v787 = vadd.f32 %v783, %v786
  %vm788 = vweird.f32 %v782
  %vm789 = vweird.f32 %v783
  %vm790 = vmor %vm788, %vm789
  %v791 = vsel %vm790, %v783, %v787
  %v792 = vand.u32 2147483647, %v782
  %vm793 = vcmp.eq.f32.partialorder %v792, 8.507059e+37
  %v794 = vand.u32 %v782, 2147483648
  %v795 = vor.u32 1.1754944e-38, %v794
  %v796 = vsel %vm793, %v795, %v791
  %v797 = vmul.f32 1.0, %v796
  %v798 = vadd.f32 %v775, %v118
  %v799 = vadd.f32 %v718, %v172
  %801 = vrot.lane.b32.xlu0 %v799, 64
  %v802 = vpop.permute.xlu0 %801
  %v804 = vmul.f32 %v797, %v802
  %806 = vrot.lane.b32.xlu0 %v804, 64
  %v807 = vpop.permute.xlu0 %806
  %v809 = vadd.f32 %v798, %v807
  %v810 = vtanh.pop %v809
  %v811 = vsub.f32 1.0, %v797
  %813 = vrot.lane.b32.xlu0 %v810, 96
  %v814 = vpop.permute.xlu0 %813
  %v816 = vmul.f32 %v811, %v814
  %v817 = vmul.f32 %v797, %v694
  %v818 = vadd.f32 %v816, %v817
  %820 = vrot.lane.b32.xlu0 %v818, 96
  %v821 = vpop.permute.xlu0 %820
  %v822 = vsel %vm76, %v821, 0
  %824 = vmatpush.msra.mxu0 0.0
  %825 = vmatpush.msra.mxu0 0.0
  %826 = vmatpush.msra.mxu0 0.0
  %827 = vmatpush.msra.mxu0 0.0
  %828 = vmatpush.msra.mxu0 0.0
  %829 = vmatpush.msra.mxu0 0.0
  %830 = vmatpush.msra.mxu0 0.0
  %831 = vmatpush.msra.mxu0 0.0
  %832 = vmatpush.msra.mxu0 0.0
  %833 = vmatpush.msra.mxu0 0.0
  %834 = vmatpush.msra.mxu0 0.0
  %835 = vmatpush.msra.mxu0 0.0
  %836 = vmatpush.msra.mxu0 %v25
  %837 = vmatpush.msra.mxu0 %v24
  %838 = vmatpush.msra.mxu0 %v23
  %839 = vmatpush.msra.mxu0 %v22
  %840 = vmatmul.f32.gmra.mxu0 %v822
  %v841 = vpop.f32.mrf.mxu0
  %v842 = vadd.f32 0.0, %v841
  %843 = vdwg.mxu0
  %844 = vrot.lane.b32.xlu0 %v117, 16
  %v845 = vpop.permute.xlu0 %844
  %v847 = vadd.f32 %v842, %v845
  %v848 = vsel %vm227, %v847, -inf
  %849 = vmax.xlane.f32.xlu0 %v848
  %v850 = vpop.xlane.xlu0 %849
  %vm851 = vcmp.ge.f32.partialorder %v847, %v850
  %v852 = vsel %vm851, %v233, 16
  %v853 = vsel %vm227, %v852, 2147483647
  %v854 = vand.u32 %v853, 65535
  %v855 = vshra.s32 %v853, 16
  %v856 = vcvt.s32.f32 %v854
  %v857 = vcvt.s32.f32 %v855
  %858 = vmin.xlane.f32.xlu0 %v857
  %v859 = vpop.xlane.xlu0 %858
  %vm860 = vcmp.eq.f32.partialorder %v857, %v859
  %v861 = vsel %vm860, %v856, inf
  %862 = vmin.xlane.f32.xlu0 %v861
  %v863 = vpop.xlane.xlu0 %862
  %v864 = vcvt.f32.s32 %v863
  %v865 = vcvt.f32.s32 %v859
  %v866 = vshll.u32 %v865, 16
  %v867 = vadd.s32 %v866, %v864
  %vm868 = vcmp.eq.s32.totalorder %v120, %v867
  %v869 = vsel %vm868, 1, 0
  %v870 = vcvt.s32.f32 %v869
  %vm871 = vcmp.eq.s32.totalorder %v867, 3
  %vm872 = vmor %vm748, %vm871
  %vm873 = vmxor %vm872, 1
  %v874 = vsel %vm873, 1, 0
  %vm875 = vcmp.eq.s32.totalorder %v874, 1
  %v876 = vsel %vm875, %v870, %v123
  %v877 = vadd.s32 %v753, %v874
  %v879 = vsel %vm41, %v870, 0
  %881 = vmatpush.msra.mxu0 0.0
  %882 = vmatpush.msra.mxu0 0.0
  %883 = vmatpush.msra.mxu0 0.0
  %884 = vmatpush.msra.mxu0 0.0
  %885 = vmatpush.msra.mxu0 0.0
  %886 = vmatpush.msra.mxu0 0.0
  %887 = vmatpush.msra.mxu0 0.0
  %888 = vmatpush.msra.mxu0 0.0
  %889 = vmatpush.msra.mxu0 0.0
  %890 = vmatpush.msra.mxu0 0.0
  %891 = vmatpush.msra.mxu0 0.0
  %892 = vmatpush.msra.mxu0 0.0
  %893 = vmatpush.msra.mxu0 0.0
  %894 = vmatpush.msra.mxu0 0.0
  %895 = vmatpush.msra.mxu0 %v27
  %896 = vmatpush.msra.mxu0 %v26
  %897 = vmatmul.f32.gmra.mxu0 %v879
  %v898 = vpop.f32.mrf.mxu0
  %v899 = vadd.f32 0.0, %v898
  %900 = vdwg.mxu0
  %v901 = vadd.f32 %v899, %v842
  %v902 = vadd.f32 %v901, %v118
  %v903 = vxor.u32 %v902, 2147483648
  %v904 = vmul.f32 %v903, 1.442695
  %v905 = vpow.pop %v904
  %v906 = vadd.f32 %v905, 1.0
  %v907 = vrcp.pop %v906
  %v908 = vmul.f32 %v906, %v907
  %v909 = vsub.f32 1.0, %v908
  %v910 = vmul.f32 %v907, %v909
  %v911 = vadd.f32 %v907, %v910
  %vm912 = vweird.f32 %v906
  %vm913 = vweird.f32 %v907
  %vm914 = vmor %vm912, %vm913
  %v915 = vsel %vm914, %v907, %v911
  %v916 = vand.u32 2147483647, %v906
  %vm917 = vcmp.eq.f32.partialorder %v916, 8.507059e+37
  %v918 = vand.u32 %v906, 2147483648
  %v919 = vor.u32 1.1754944e-38, %v918
  %v920 = vsel %vm917, %v919, %v915
  %v921 = vmul.f32 1.0, %v920
  %v922 = vadd.f32 %v899, %v118
  %v923 = vadd.f32 %v842, %v172
  %925 = vrot.lane.b32.xlu0 %v923, 64
  %v926 = vpop.permute.xlu0 %925
  %v928 = vmul.f32 %v921, %v926
  %930 = vrot.lane.b32.xlu0 %v928, 64
  %v931 = vpop.permute.xlu0 %930
  %v933 = vadd.f32 %v922, %v931
  %v934 = vtanh.pop %v933
  %v935 = vsub.f32 1.0, %v921
  %937 = vrot.lane.b32.xlu0 %v934, 96
  %v938 = vpop.permute.xlu0 %937
  %v940 = vmul.f32 %v935, %v938
  %v941 = vmul.f32 %v921, %v818
  %v942 = vadd.f32 %v940, %v941
  %944 = vrot.lane.b32.xlu0 %v942, 96
  %v945 = vpop.permute.xlu0 %944
  %v946 = vsel %vm76, %v945, 0
  %948 = vmatpush.msra.mxu0 0.0
  %949 = vmatpush.msra.mxu0 0.0
  %950 = vmatpush.msra.mxu0 0.0
  %951 = vmatpush.msra.mxu0 0.0
  %952 = vmatpush.msra.mxu0 0.0
  %953 = vmatpush.msra.mxu0 0.0
  %954 = vmatpush.msra.mxu0 0.0
  %955 = vmatpush.msra.mxu0 0.0
  %956 = vmatpush.msra.mxu0 0.0
  %957 = vmatpush.msra.mxu0 0.0
  %958 = vmatpush.msra.mxu0 0.0
  %959 = vmatpush.msra.mxu0 0.0
  %960 = vmatpush.msra.mxu0 %v25
  %961 = vmatpush.msra.mxu0 %v24
  %962 = vmatpush.msra.mxu0 %v23
  %963 = vmatpush.msra.mxu0 %v22
  %964 = vmatmul.f32.gmra.mxu0 %v946
  %v965 = vpop.f32.mrf.mxu0
  %v966 = vadd.f32 0.0, %v965
  %967 = vdwg.mxu0
  %v968 = vadd.f32 %v966, %v117
  %v969 = vsel %vm227, %v968, -inf
  %970 = vmax.xlane.f32.xlu0 %v969
  %v971 = vpop.xlane.xlu0 %970
  %vm972 = vcmp.ge.f32.partialorder %v968, %v971
  %v973 = vsel %vm972, %v233, 16
  %v974 = vsel %vm227, %v973, 2147483647
  %v975 = vand.u32 %v974, 65535
  %v976 = vshra.s32 %v974, 16
  %v977 = vcvt.s32.f32 %v975
  %v978 = vcvt.s32.f32 %v976
  %979 = vmin.xlane.f32.xlu0 %v978
  %v980 = vpop.xlane.xlu0 %979
  %vm981 = vcmp.eq.f32.partialorder %v978, %v980
  %v982 = vsel %vm981, %v977, inf
  %983 = vmin.xlane.f32.xlu0 %v982
  %v984 = vpop.xlane.xlu0 %983
  %v985 = vcvt.f32.s32 %v984
  %v986 = vcvt.f32.s32 %v980
  %v987 = vshll.u32 %v986, 16
  %v988 = vadd.s32 %v987, %v985
  %vm989 = vcmp.eq.s32.totalorder %v120, %v988
  %v990 = vsel %vm989, 1, 0
  %v991 = vcvt.s32.f32 %v990
  %vm992 = vcmp.eq.s32.totalorder %v988, 3
  %vm993 = vmor %vm872, %vm992
  %vm994 = vmxor %vm993, 1
  %v995 = vsel %vm994, 1, 0
  %vm996 = vcmp.eq.s32.totalorder %v995, 1
  %v997 = vsel %vm996, %v991, %v123
  %v998 = vadd.s32 %v877, %v995
  %1000 = vrot.lane.b32.xlu0 %v380, 16
  %v1001 = vpop.permute.xlu0 %1000
  %1004 = vrot.lane.b32.xlu0 %v504, 32
  %v1005 = vpop.permute.xlu0 %1004
  %1008 = vrot.lane.b32.xlu0 %v628, 48
  %v1009 = vpop.permute.xlu0 %1008
  %1012 = vrot.lane.b32.xlu0 %v752, 64
  %v1013 = vpop.permute.xlu0 %1012
  %1016 = vrot.lane.b32.xlu0 %v876, 80
  %v1017 = vpop.permute.xlu0 %1016
  %1020 = vrot.lane.b32.xlu0 %v997, 96
  %v1021 = vpop.permute.xlu0 %1020
  %1024 = vrot.lane.b32.xlu0 %v123, 112
  %v1025 = vpop.permute.xlu0 %1024
  %v1027 = vsel %vm41, %v257, %v1001
  %v1028 = vsel %vm76, %v1027, %v1005
  %vm1029 = vcmask 392192
  %v1030 = vsel %vm1029, %v1028, %v1009
  %vm1031 = vcmask 523264
  %v1032 = vsel %vm1031, %v1030, %v1013
  %vm1033 = vcmask 654336
  %v1034 = vsel %vm1033, %v1032, %v1017
  %vm1035 = vcmask 785408
  %v1036 = vsel %vm1035, %v1034, %v1021
  %vm1037 = vcmask 916480
  %v1038 = vsel %vm1037, %v1036, %v1025
  %1039 = vst [vmem:[%s4] sm:$0x3] %v1038
  %v1040 = vadd.s32 %v998, 1
  %vm1041 = vcmask 1024
  %1042 = vst.msk [vmem:[%s5] sm:$0x3] %vm1041, %v1040
  %v1043 = vperm.slane %v38, 3
  %v1044 = vrot.slane %v380, 6
  %v1046 = vrot.slane %v504, 4
  %v1048 = vrot.slane %v628, 2
  %v1050 = vrot.slane %v876, 6
  %v1052 = vrot.slane %v997, 4
  %vm1054 = vcmask 1041408
  %v1055 = vsel %vm1054, %v257, %v1044
  %vm1056 = vcmask 1043456
  %v1057 = vsel %vm1056, %v1055, %v1046
  %vm1058 = vcmask 1045504
  %v1059 = vsel %vm1058, %v1057, %v1048
  %v1060 = vsel %vm1054, %v752, %v1050
  %v1061 = vsel %vm1056, %v1060, %v1052
  %v1063 = vsel %vm41, %v1059, 0
  %v1066 = vsel %vm41, %v1061, 0
  %1068 = vmatpush.msra.mxu0 0.0
  %1069 = vmatpush.msra.mxu0 0.0
  %1070 = vmatpush.msra.mxu0 0.0
  %1071 = vmatpush.msra.mxu0 0.0
  %1072 = vmatpush.msra.mxu0 0.0
  %1073 = vmatpush.msra.mxu0 0.0
  %1074 = vmatpush.msra.mxu0 0.0
  %1075 = vmatpush.msra.mxu0 0.0
  %1076 = vmatpush.msra.mxu0 0.0
  %1077 = vmatpush.msra.mxu0 0.0
  %1078 = vmatpush.msra.mxu0 0.0
  %1079 = vmatpush.msra.mxu0 0.0
  %1080 = vmatpush.msra.mxu0 0.0
  %1081 = vmatpush.msra.mxu0 0.0
  %1082 = vmatpush.msra.mxu0 %v29
  %1083 = vmatpush.msra.mxu0 %v28
  %1084 = vmatmul.f32.gmra.mxu0 %v1063
  %v1085 = vpop.f32.mrf.mxu0
  %v1086 = vadd.f32 0.0, %v1085
  %1087 = vmatmul.f32.gmra.mxu0 %v1066
  %v1088 = vpop.f32.mrf.mxu0
  %v1089 = vadd.f32 0.0, %v1088
  %1090 = vdwg.mxu0
  %v1091 = vadd.f32 %v1086, 0.0
  %v1092 = vadd.f32 %v1091, %v1043
  %v1093 = vxor.u32 %v1092, 2147483648
  %v1094 = vmul.f32 %v1093, 1.442695
  %v1095 = vpow.pop %v1094
  %v1096 = vadd.f32 %v1095, 1.0
  %v1097 = vrcp.pop %v1096
  %v1098 = vmul.f32 %v1096, %v1097
  %v1099 = vsub.f32 1.0, %v1098
  %v1100 = vmul.f32 %v1097, %v1099
  %v1101 = vadd.f32 %v1097, %v1100
  %vm1102 = vweird.f32 %v1096
  %vm1103 = vweird.f32 %v1097
  %vm1104 = vmor %vm1102, %vm1103
  %v1105 = vsel %vm1104, %v1097, %v1101
  %v1106 = vand.u32 2147483647, %v1096
  %vm1107 = vcmp.eq.f32.partialorder %v1106, 8.507059e+37
  %v1108 = vand.u32 %v1096, 2147483648
  %v1109 = vor.u32 1.1754944e-38, %v1108
  %v1110 = vsel %vm1107, %v1109, %v1105
  %v1111 = vmul.f32 1.0, %v1110
  %v1112 = vadd.f32 %v1086, %v1043
  %v1113 = vadd.f32 %v1043, 0.0
  %1115 = vrot.lane.b32.xlu0 %v1113, 32
  %v1116 = vpop.permute.xlu0 %1115
  %v1118 = vmul.f32 %v1111, %v1116
  %1120 = vrot.lane.b32.xlu0 %v1118, 64
  %v1121 = vpop.permute.xlu0 %1120
  %v1123 = vadd.f32 %v1112, %v1121
  %v1124 = vtanh.pop %v1123
  %v1125 = vsub.f32 1.0, %v1111
  %1127 = vrot.lane.b32.xlu0 %v1124, 96
  %v1128 = vpop.permute.xlu0 %1127
  %v1130 = vmul.f32 %v1125, %v1128
  %v1131 = vmul.f32 %v1111, 0.0
  %v1132 = vadd.f32 %v1130, %v1131
  %v1133 = vsel %vm256, %v1132, 0.0
  %1135 = vrot.lane.b32.xlu0 %v1133, 96
  %v1136 = vpop.permute.xlu0 %1135
  %v1137 = vsel %vm76, %v1136, 0
  %1139 = vmatpush.msra.mxu0 0.0
  %1140 = vmatpush.msra.mxu0 0.0
  %1141 = vmatpush.msra.mxu0 0.0
  %1142 = vmatpush.msra.mxu0 0.0
  %1143 = vmatpush.msra.mxu0 0.0
  %1144 = vmatpush.msra.mxu0 0.0
  %1145 = vmatpush.msra.mxu0 0.0
  %1146 = vmatpush.msra.mxu0 0.0
  %1147 = vmatpush.msra.mxu0 0.0
  %1148 = vmatpush.msra.mxu0 0.0
  %1149 = vmatpush.msra.mxu0 0.0
  %1150 = vmatpush.msra.mxu0 0.0
  %1151 = vmatpush.msra.mxu0 %v33
  %1152 = vmatpush.msra.mxu0 %v32
  %1153 = vmatpush.msra.mxu0 %v31
  %1154 = vmatpush.msra.mxu0 %v30
  %1155 = vmatmul.f32.gmra.mxu0 %v1137
  %v1156 = vpop.f32.mrf.mxu0
  %v1157 = vadd.f32 0.0, %v1156
  %1158 = vdwg.mxu0
  %v1160 = vrot.slane %v1157, 6
  %v1162 = vadd.f32 %v1086, %v1160
  %v1163 = vadd.f32 %v1162, %v1043
  %v1164 = vxor.u32 %v1163, 2147483648
  %v1165 = vmul.f32 %v1164, 1.442695
  %v1166 = vpow.pop %v1165
  %v1167 = vadd.f32 %v1166, 1.0
  %v1168 = vrcp.pop %v1167
  %v1169 = vmul.f32 %v1167, %v1168
  %v1170 = vsub.f32 1.0, %v1169
  %v1171 = vmul.f32 %v1168, %v1170
  %v1172 = vadd.f32 %v1168, %v1171
  %vm1173 = vweird.f32 %v1167
  %vm1174 = vweird.f32 %v1168
  %vm1175 = vmor %vm1173, %vm1174
  %v1176 = vsel %vm1175, %v1168, %v1172
  %v1177 = vand.u32 2147483647, %v1167
  %vm1178 = vcmp.eq.f32.partialorder %v1177, 8.507059e+37
  %v1179 = vand.u32 %v1167, 2147483648
  %v1180 = vor.u32 1.1754944e-38, %v1179
  %v1181 = vsel %vm1178, %v1180, %v1176
  %v1182 = vmul.f32 1.0, %v1181
  %1184 = vrot.lane.b32.xlu0 %v1043, 96
  %v1185 = vpop.permute.xlu0 %1184
  %v1187 = vadd.f32 %v1157, %v1185
  %v1189 = vrot.slane %v1187, 6
  %1190 = vrot.lane.b32.xlu0 %v1189, 64
  %v1191 = vpop.permute.xlu0 %1190
  %v1193 = vmul.f32 %v1182, %v1191
  %1195 = vrot.lane.b32.xlu0 %v1193, 64
  %v1196 = vpop.permute.xlu0 %1195
  %v1198 = vadd.f32 %v1112, %v1196
  %v1199 = vtanh.pop %v1198
  %v1200 = vsub.f32 1.0, %v1182
  %1202 = vrot.lane.b32.xlu0 %v1199, 96
  %v1203 = vpop.permute.xlu0 %1202
  %v1205 = vmul.f32 %v1200, %v1203
  %v1206 = vrot.slane %v1133, 6
  %v1208 = vmul.f32 %v1182, %v1206
  %v1209 = vadd.f32 %v1205, %v1208
  %v1211 = vrot.slane %v1209, 2
  %1212 = vrot.lane.b32.xlu0 %v1211, 96
  %v1213 = vpop.permute.xlu0 %1212
  %v1216 = vsel %vm379, %v1213, %v1136
  %v1218 = vsel %vm76, %v1216, 0
  %1220 = vmatpush.msra.mxu0 0.0
  %1221 = vmatpush.msra.mxu0 0.0
  %1222 = vmatpush.msra.mxu0 0.0
  %1223 = vmatpush.msra.mxu0 0.0
  %1224 = vmatpush.msra.mxu0 0.0
  %1225 = vmatpush.msra.mxu0 0.0
  %1226 = vmatpush.msra.mxu0 0.0
  %1227 = vmatpush.msra.mxu0 0.0
  %1228 = vmatpush.msra.mxu0 0.0
  %1229 = vmatpush.msra.mxu0 0.0
  %1230 = vmatpush.msra.mxu0 0.0
  %1231 = vmatpush.msra.mxu0 0.0
  %1232 = vmatpush.msra.mxu0 %v33
  %1233 = vmatpush.msra.mxu0 %v32
  %1234 = vmatpush.msra.mxu0 %v31
  %1235 = vmatpush.msra.mxu0 %v30
  %1236 = vmatmul.f32.gmra.mxu0 %v1218
  %v1237 = vpop.f32.mrf.mxu0
  %v1238 = vadd.f32 0.0, %v1237
  %1239 = vdwg.mxu0
  %v1241 = vrot.slane %v1238, 4
  %v1243 = vadd.f32 %v1086, %v1241
  %v1244 = vadd.f32 %v1243, %v1043
  %v1245 = vxor.u32 %v1244, 2147483648
  %v1246 = vmul.f32 %v1245, 1.442695
  %v1247 = vpow.pop %v1246
  %v1248 = vadd.f32 %v1247, 1.0
  %v1249 = vrcp.pop %v1248
  %v1250 = vmul.f32 %v1248, %v1249
  %v1251 = vsub.f32 1.0, %v1250
  %v1252 = vmul.f32 %v1249, %v1251
  %v1253 = vadd.f32 %v1249, %v1252
  %vm1254 = vweird.f32 %v1248
  %vm1255 = vweird.f32 %v1249
  %vm1256 = vmor %vm1254, %vm1255
  %v1257 = vsel %vm1256, %v1249, %v1253
  %v1258 = vand.u32 2147483647, %v1248
  %vm1259 = vcmp.eq.f32.partialorder %v1258, 8.507059e+37
  %v1260 = vand.u32 %v1248, 2147483648
  %v1261 = vor.u32 1.1754944e-38, %v1260
  %v1262 = vsel %vm1259, %v1261, %v1257
  %v1263 = vmul.f32 1.0, %v1262
  %v1264 = vadd.f32 %v1238, %v1185
  %v1266 = vrot.slane %v1264, 4
  %1267 = vrot.lane.b32.xlu0 %v1266, 64
  %v1268 = vpop.permute.xlu0 %1267
  %v1270 = vmul.f32 %v1263, %v1268
  %1272 = vrot.lane.b32.xlu0 %v1270, 64
  %v1273 = vpop.permute.xlu0 %1272
  %v1275 = vadd.f32 %v1112, %v1273
  %v1276 = vtanh.pop %v1275
  %v1277 = vsub.f32 1.0, %v1263
  %1279 = vrot.lane.b32.xlu0 %v1276, 96
  %v1280 = vpop.permute.xlu0 %1279
  %v1282 = vmul.f32 %v1277, %v1280
  %v1283 = vrot.slane %v1216, 4
  %1284 = vrot.lane.b32.xlu0 %v1283, 32
  %v1285 = vpop.permute.xlu0 %1284
  %v1287 = vmul.f32 %v1263, %v1285
  %v1288 = vadd.f32 %v1282, %v1287
  %v1290 = vrot.slane %v1288, 4
  %1291 = vrot.lane.b32.xlu0 %v1290, 96
  %v1292 = vpop.permute.xlu0 %1291
  %v1294 = vsel %vm503, %v1292, %v1216
  %v1296 = vsel %vm76, %v1294, 0
  %1298 = vmatpush.msra.mxu0 0.0
  %1299 = vmatpush.msra.mxu0 0.0
  %1300 = vmatpush.msra.mxu0 0.0
  %1301 = vmatpush.msra.mxu0 0.0
  %1302 = vmatpush.msra.mxu0 0.0
  %1303 = vmatpush.msra.mxu0 0.0
  %1304 = vmatpush.msra.mxu0 0.0
  %1305 = vmatpush.msra.mxu0 0.0
  %1306 = vmatpush.msra.mxu0 0.0
  %1307 = vmatpush.msra.mxu0 0.0
  %1308 = vmatpush.msra.mxu0 0.0
  %1309 = vmatpush.msra.mxu0 0.0
  %1310 = vmatpush.msra.mxu0 %v33
  %1311 = vmatpush.msra.mxu0 %v32
  %1312 = vmatpush.msra.mxu0 %v31
  %1313 = vmatpush.msra.mxu0 %v30
  %1314 = vmatmul.f32.gmra.mxu0 %v1296
  %v1315 = vpop.f32.mrf.mxu0
  %v1316 = vadd.f32 0.0, %v1315
  %1317 = vdwg.mxu0
  %v1319 = vrot.slane %v1316, 2
  %v1321 = vadd.f32 %v1086, %v1319
  %v1322 = vadd.f32 %v1321, %v1043
  %v1323 = vxor.u32 %v1322, 2147483648
  %v1324 = vmul.f32 %v1323, 1.442695
  %v1325 = vpow.pop %v1324
  %v1326 = vadd.f32 %v1325, 1.0
  %v1327 = vrcp.pop %v1326
  %v1328 = vmul.f32 %v1326, %v1327
  %v1329 = vsub.f32 1.0, %v1328
  %v1330 = vmul.f32 %v1327, %v1329
  %v1331 = vadd.f32 %v1327, %v1330
  %vm1332 = vweird.f32 %v1326
  %vm1333 = vweird.f32 %v1327
  %vm1334 = vmor %vm1332, %vm1333
  %v1335 = vsel %vm1334, %v1327, %v1331
  %v1336 = vand.u32 2147483647, %v1326
  %vm1337 = vcmp.eq.f32.partialorder %v1336, 8.507059e+37
  %v1338 = vand.u32 %v1326, 2147483648
  %v1339 = vor.u32 1.1754944e-38, %v1338
  %v1340 = vsel %vm1337, %v1339, %v1335
  %v1341 = vmul.f32 1.0, %v1340
  %v1342 = vadd.f32 %v1316, %v1185
  %v1344 = vrot.slane %v1342, 2
  %1345 = vrot.lane.b32.xlu0 %v1344, 64
  %v1346 = vpop.permute.xlu0 %1345
  %v1348 = vmul.f32 %v1341, %v1346
  %1350 = vrot.lane.b32.xlu0 %v1348, 64
  %v1351 = vpop.permute.xlu0 %1350
  %v1353 = vadd.f32 %v1112, %v1351
  %v1354 = vtanh.pop %v1353
  %v1355 = vsub.f32 1.0, %v1341
  %1357 = vrot.lane.b32.xlu0 %v1354, 96
  %v1358 = vpop.permute.xlu0 %1357
  %v1360 = vmul.f32 %v1355, %v1358
  %v1361 = vrot.slane %v1294, 2
  %1362 = vrot.lane.b32.xlu0 %v1361, 32
  %v1363 = vpop.permute.xlu0 %1362
  %v1365 = vmul.f32 %v1341, %v1363
  %v1366 = vadd.f32 %v1360, %v1365
  %v1368 = vrot.slane %v1366, 6
  %1369 = vrot.lane.b32.xlu0 %v1368, 96
  %v1370 = vpop.permute.xlu0 %1369
  %v1372 = vsel %vm627, %v1370, %v1294
  %v1374 = vsel %vm76, %v1372, 0
  %1376 = vmatpush.msra.mxu0 0.0
  %1377 = vmatpush.msra.mxu0 0.0
  %1378 = vmatpush.msra.mxu0 0.0
  %1379 = vmatpush.msra.mxu0 0.0
  %1380 = vmatpush.msra.mxu0 0.0
  %1381 = vmatpush.msra.mxu0 0.0
  %1382 = vmatpush.msra.mxu0 0.0
  %1383 = vmatpush.msra.mxu0 0.0
  %1384 = vmatpush.msra.mxu0 0.0
  %1385 = vmatpush.msra.mxu0 0.0
  %1386 = vmatpush.msra.mxu0 0.0
  %1387 = vmatpush.msra.mxu0 0.0
  %1388 = vmatpush.msra.mxu0 %v33
  %1389 = vmatpush.msra.mxu0 %v32
  %1390 = vmatpush.msra.mxu0 %v31
  %1391 = vmatpush.msra.mxu0 %v30
  %1392 = vmatmul.f32.gmra.mxu0 %v1374
  %v1393 = vpop.f32.mrf.mxu0
  %v1394 = vadd.f32 0.0, %v1393
  %1395 = vdwg.mxu0
  %v1396 = vadd.f32 %v1089, %v1394
  %v1397 = vadd.f32 %v1396, %v1043
  %v1398 = vxor.u32 %v1397, 2147483648
  %v1399 = vmul.f32 %v1398, 1.442695
  %v1400 = vpow.pop %v1399
  %v1401 = vadd.f32 %v1400, 1.0
  %v1402 = vrcp.pop %v1401
  %v1403 = vmul.f32 %v1401, %v1402
  %v1404 = vsub.f32 1.0, %v1403
  %v1405 = vmul.f32 %v1402, %v1404
  %v1406 = vadd.f32 %v1402, %v1405
  %vm1407 = vweird.f32 %v1401
  %vm1408 = vweird.f32 %v1402
  %vm1409 = vmor %vm1407, %vm1408
  %v1410 = vsel %vm1409, %v1402, %v1406
  %v1411 = vand.u32 2147483647, %v1401
  %vm1412 = vcmp.eq.f32.partialorder %v1411, 8.507059e+37
  %v1413 = vand.u32 %v1401, 2147483648
  %v1414 = vor.u32 1.1754944e-38, %v1413
  %v1415 = vsel %vm1412, %v1414, %v1410
  %v1416 = vmul.f32 1.0, %v1415
  %v1417 = vadd.f32 %v1089, %v1043
  %v1418 = vadd.f32 %v1394, %v1185
  %1420 = vrot.lane.b32.xlu0 %v1418, 64
  %v1421 = vpop.permute.xlu0 %1420
  %v1423 = vmul.f32 %v1416, %v1421
  %1425 = vrot.lane.b32.xlu0 %v1423, 64
  %v1426 = vpop.permute.xlu0 %1425
  %v1428 = vadd.f32 %v1417, %v1426
  %v1429 = vtanh.pop %v1428
  %v1430 = vsub.f32 1.0, %v1416
  %1432 = vrot.lane.b32.xlu0 %v1429, 96
  %v1433 = vpop.permute.xlu0 %1432
  %v1435 = vmul.f32 %v1430, %v1433
  %1436 = vrot.lane.b32.xlu0 %v1372, 32
  %v1437 = vpop.permute.xlu0 %1436
  %v1439 = vmul.f32 %v1416, %v1437
  %v1440 = vadd.f32 %v1435, %v1439
  %v1441 = vsel %vm751, %v1440, %v1437
  %1443 = vrot.lane.b32.xlu0 %v1441, 96
  %v1444 = vpop.permute.xlu0 %1443
  %v1445 = vsel %vm76, %v1444, 0
  %1447 = vmatpush.msra.mxu0 0.0
  %1448 = vmatpush.msra.mxu0 0.0
  %1449 = vmatpush.msra.mxu0 0.0
  %1450 = vmatpush.msra.mxu0 0.0
  %1451 = vmatpush.msra.mxu0 0.0
  %1452 = vmatpush.msra.mxu0 0.0
  %1453 = vmatpush.msra.mxu0 0.0
  %1454 = vmatpush.msra.mxu0 0.0
  %1455 = vmatpush.msra.mxu0 0.0
  %1456 = vmatpush.msra.mxu0 0.0
  %1457 = vmatpush.msra.mxu0 0.0
  %1458 = vmatpush.msra.mxu0 0.0
  %1459 = vmatpush.msra.mxu0 %v33
  %1460 = vmatpush.msra.mxu0 %v32
  %1461 = vmatpush.msra.mxu0 %v31
  %1462 = vmatpush.msra.mxu0 %v30
  %1463 = vmatmul.f32.gmra.mxu0 %v1445
  %v1464 = vpop.f32.mrf.mxu0
  %v1465 = vadd.f32 0.0, %v1464
  %1466 = vdwg.mxu0
  %v1468 = vrot.slane %v1465, 6
  %v1470 = vadd.f32 %v1089, %v1468
  %v1471 = vadd.f32 %v1470, %v1043
  %v1472 = vxor.u32 %v1471, 2147483648
  %v1473 = vmul.f32 %v1472, 1.442695
  %v1474 = vpow.pop %v1473
  %v1475 = vadd.f32 %v1474, 1.0
  %v1476 = vrcp.pop %v1475
  %v1477 = vmul.f32 %v1475, %v1476
  %v1478 = vsub.f32 1.0, %v1477
  %v1479 = vmul.f32 %v1476, %v1478
  %v1480 = vadd.f32 %v1476, %v1479
  %vm1481 = vweird.f32 %v1475
  %vm1482 = vweird.f32 %v1476
  %vm1483 = vmor %vm1481, %vm1482
  %v1484 = vsel %vm1483, %v1476, %v1480
  %v1485 = vand.u32 2147483647, %v1475
  %vm1486 = vcmp.eq.f32.partialorder %v1485, 8.507059e+37
  %v1487 = vand.u32 %v1475, 2147483648
  %v1488 = vor.u32 1.1754944e-38, %v1487
  %v1489 = vsel %vm1486, %v1488, %v1484
  %v1490 = vmul.f32 1.0, %v1489
  %v1491 = vadd.f32 %v1465, %v1185
  %v1493 = vrot.slane %v1491, 6
  %1494 = vrot.lane.b32.xlu0 %v1493, 64
  %v1495 = vpop.permute.xlu0 %1494
  %v1497 = vmul.f32 %v1490, %v1495
  %1499 = vrot.lane.b32.xlu0 %v1497, 64
  %v1500 = vpop.permute.xlu0 %1499
  %v1502 = vadd.f32 %v1417, %v1500
  %v1503 = vtanh.pop %v1502
  %v1504 = vsub.f32 1.0, %v1490
  %1506 = vrot.lane.b32.xlu0 %v1503, 96
  %v1507 = vpop.permute.xlu0 %1506
  %v1509 = vmul.f32 %v1504, %v1507
  %v1510 = vrot.slane %v1441, 6
  %v1512 = vmul.f32 %v1490, %v1510
  %v1513 = vadd.f32 %v1509, %v1512
  %v1515 = vrot.slane %v1513, 2
  %1516 = vrot.lane.b32.xlu0 %v1515, 96
  %v1517 = vpop.permute.xlu0 %1516
  %v1520 = vsel %vm875, %v1517, %v1444
  %v1522 = vsel %vm76, %v1520, 0
  %1524 = vmatpush.msra.mxu0 0.0
  %1525 = vmatpush.msra.mxu0 0.0
  %1526 = vmatpush.msra.mxu0 0.0
  %1527 = vmatpush.msra.mxu0 0.0
  %1528 = vmatpush.msra.mxu0 0.0
  %1529 = vmatpush.msra.mxu0 0.0
  %1530 = vmatpush.msra.mxu0 0.0
  %1531 = vmatpush.msra.mxu0 0.0
  %1532 = vmatpush.msra.mxu0 0.0
  %1533 = vmatpush.msra.mxu0 0.0
  %1534 = vmatpush.msra.mxu0 0.0
  %1535 = vmatpush.msra.mxu0 0.0
  %1536 = vmatpush.msra.mxu0 %v33
  %1537 = vmatpush.msra.mxu0 %v32
  %1538 = vmatpush.msra.mxu0 %v31
  %1539 = vmatpush.msra.mxu0 %v30
  %1540 = vmatmul.f32.gmra.mxu0 %v1522
  %v1541 = vpop.f32.mrf.mxu0
  %v1542 = vadd.f32 0.0, %v1541
  %1543 = vdwg.mxu0
  %v1545 = vrot.slane %v1542, 4
  %v1547 = vadd.f32 %v1089, %v1545
  %v1548 = vadd.f32 %v1547, %v1043
  %v1549 = vxor.u32 %v1548, 2147483648
  %v1550 = vmul.f32 %v1549, 1.442695
  %v1551 = vpow.pop %v1550
  %v1552 = vadd.f32 %v1551, 1.0
  %v1553 = vrcp.pop %v1552
  %v1554 = vmul.f32 %v1552, %v1553
  %v1555 = vsub.f32 1.0, %v1554
  %v1556 = vmul.f32 %v1553, %v1555
  %v1557 = vadd.f32 %v1553, %v1556
  %vm1558 = vweird.f32 %v1552
  %vm1559 = vweird.f32 %v1553
  %vm1560 = vmor %vm1558, %vm1559
  %v1561 = vsel %vm1560, %v1553, %v1557
  %v1562 = vand.u32 2147483647, %v1552
  %vm1563 = vcmp.eq.f32.partialorder %v1562, 8.507059e+37
  %v1564 = vand.u32 %v1552, 2147483648
  %v1565 = vor.u32 1.1754944e-38, %v1564
  %v1566 = vsel %vm1563, %v1565, %v1561
  %v1567 = vmul.f32 1.0, %v1566
  %v1568 = vadd.f32 %v1542, %v1185
  %v1570 = vrot.slane %v1568, 4
  %1571 = vrot.lane.b32.xlu0 %v1570, 64
  %v1572 = vpop.permute.xlu0 %1571
  %v1574 = vmul.f32 %v1567, %v1572
  %1576 = vrot.lane.b32.xlu0 %v1574, 64
  %v1577 = vpop.permute.xlu0 %1576
  %v1579 = vadd.f32 %v1417, %v1577
  %v1580 = vtanh.pop %v1579
  %v1581 = vsub.f32 1.0, %v1567
  %1583 = vrot.lane.b32.xlu0 %v1580, 96
  %v1584 = vpop.permute.xlu0 %1583
  %v1586 = vmul.f32 %v1581, %v1584
  %v1587 = vrot.slane %v1520, 4
  %1588 = vrot.lane.b32.xlu0 %v1587, 32
  %v1589 = vpop.permute.xlu0 %1588
  %v1591 = vmul.f32 %v1567, %v1589
  %v1592 = vadd.f32 %v1586, %v1591
  %v1594 = vrot.slane %v1592, 4
  %1595 = vrot.lane.b32.xlu0 %v1594, 96
  %v1596 = vpop.permute.xlu0 %1595
  %v1598 = vsel %vm996, %v1596, %v1520
  %v1600 = vsel %vm76, %v1598, 0
  %1602 = vmatpush.msra.mxu0 0.0
  %1603 = vmatpush.msra.mxu0 0.0
  %1604 = vmatpush.msra.mxu0 0.0
  %1605 = vmatpush.msra.mxu0 0.0
  %1606 = vmatpush.msra.mxu0 0.0
  %1607 = vmatpush.msra.mxu0 0.0
  %1608 = vmatpush.msra.mxu0 0.0
  %1609 = vmatpush.msra.mxu0 0.0
  %1610 = vmatpush.msra.mxu0 0.0
  %1611 = vmatpush.msra.mxu0 0.0
  %1612 = vmatpush.msra.mxu0 0.0
  %1613 = vmatpush.msra.mxu0 0.0
  %1614 = vmatpush.msra.mxu0 %v37
  %1615 = vmatpush.msra.mxu0 %v36
  %1616 = vmatpush.msra.mxu0 %v35
  %1617 = vmatpush.msra.mxu0 %v34
  %1618 = vmatmul.f32.gmra.mxu0 %v1600
  %v1619 = vpop.f32.mrf.mxu0
  %v1620 = vadd.f32 0.0, %v1619
  %1621 = vdwg.mxu0
  %v1622 = vperm.slane %v38, 4
  %v1623 = vadd.f32 %v1620, %v1622
  %v1624 = vmul.f32 %v1623, %v1623
  %v1625 = vsel %vm80, %v1624, 0.0
  %1626 = vadd.xlane.f32.xlu0 %v1625
  %v1627 = vpop.xlane.xlu0 %1626
  %v1628 = vrsqrt.pop %v1627
  %v1629 = vmul.f32 %v1628, %v1627
  %v1630 = vmul.f32 %v1629, %v1628
  %v1631 = vmul.f32 0.5, %v1630
  %v1632 = vsub.f32 1.5, %v1631
  %v1633 = vmul.f32 %v1628, %v1632
  %v1634 = vmul.f32 %v1627, %v1633
  %vm1635 = vcmp.eq.f32.partialorder %v1627, inf
  %v1636 = vsel %vm1635, %v1627, %v1634
  %vm1637 = vcmp.eq.f32.partialorder %v1627, 0.0
  %v1638 = vand.u32 %v1627, 2147483648
  %v1639 = vsel %vm1637, %v1638, %v1636
  %v1640 = vadd.f32 %v1639, 1e-09
  %v1641 = vrcp.pop %v1640
  %v1642 = vmul.f32 %v1623, %v1641
  %1643 = vst.msk [vmem:[%s6 + $0x8] sm:$0x3] %vm80, %v1642
  // Predicated region
  $region18: #{single_agent_forward.1} parent=0 // pred_check
    _
  $region19: #{single_agent_forward.1} parent=0 // pred_check_branch
    %1645 = sbr.rel (0) target = $region21
  $region20: #{single_agent_forward.1} parent=0 // pred_region
    _
  $region21: #{single_agent_forward.1} parent=0 // pred_fallthru
    _
  // Predicated region
  $region22: #{single_agent_forward.1} parent=0 // pred_check
    _
  $region23: #{single_agent_forward.1} parent=0 // pred_check_branch
    %1647 = sbr.rel (0) target = $region25
  $region24: #{single_agent_forward.1} parent=0 // pred_region
    _
  $region25: #{single_agent_forward.1} parent=0 // pred_fallthru
    _
  // Predicated region
  $region26: #{single_agent_forward.1} parent=0 // pred_check
    _
  $region27: #{single_agent_forward.1} parent=0 // pred_check_branch
    %1649 = sbr.rel (0) target = $region29
  $region28: #{single_agent_forward.1} parent=0 // pred_region
    _
  $region29: #{single_agent_forward.1} parent=0 // pred_fallthru
    _
  // Predicated region
  $region30: #{single_agent_forward.1} parent=0 // pred_check
    _
  $region31: #{single_agent_forward.1} parent=0 // pred_check_branch
    %1651 = sbr.rel (0) target = $region33
  $region32: #{single_agent_forward.1} parent=0 // pred_region
    _
  $region33: #{single_agent_forward.1} parent=0 // pred_fallthru
    _
  // Predicated region
  $region34: #{single_agent_forward.1} parent=0 // pred_check
    _
  $region35: #{single_agent_forward.1} parent=0 // pred_check_branch
    %1653 = sbr.rel (0) target = $region37
  $region36: #{single_agent_forward.1} parent=0 // pred_region
    _
  $region37: #{single_agent_forward.1} parent=0 // pred_fallthru
    _
  // Predicated region
  $region38: #{single_agent_forward.1} parent=0 // pred_check
    _
  $region39: #{single_agent_forward.1} parent=0 // pred_check_branch
    %1655 = sbr.rel (0) target = $region41
  $region40: #{single_agent_forward.1} parent=0 // pred_region
    _
  $region41: #{single_agent_forward.1} parent=0 // pred_fallthru
    _

</llo_original>
